<compile_context>
chip_gen: v5e
topology: v5e:2x2
jax: 0.10.0
libtpu: 0.0.40
codegen_flags: <defaults>
</compile_context>

<pallas_src>
import jax
import jax.numpy as jnp
from jax import lax
from jax.experimental import pallas as pl
from jax.experimental.pallas import tpu as pltpu

LN_EPS = 1e-5  # PyTorch nn.LayerNorm default


def _round_up(x, m):
    return ((x + m - 1) // m) * m


# ----------------------- grouped fused-MLP kernel ----------------------------
def _grouped_mlp_kernel(gid_ref, x_ref, w1_ref, w2_ref, g_ref, b_ref, o_ref):
    # Linear(no bias) -> SiLU -> Linear(no bias) -> LayerNorm(last dim).
    # bf16 operands on the MXU, f32 accumulation; SiLU / LayerNorm in f32.
    del gid_ref  # group selection happens in the index_maps
    h = jnp.dot(x_ref[...], w1_ref[...], preferred_element_type=jnp.float32)
    h = h * jax.nn.sigmoid(h)                                   # SiLU (f32, EUP)
    y = jnp.dot(h.astype(jnp.bfloat16), w2_ref[...],
                preferred_element_type=jnp.float32)
    mean = jnp.mean(y, axis=-1, keepdims=True)
    var = jnp.mean(jnp.square(y - mean), axis=-1, keepdims=True)
    yn = (y - mean) * lax.rsqrt(var + LN_EPS)
    o_ref[...] = yn * g_ref[...] + b_ref[...]


def grouped_mlp(xs, params, tile_cap=512):
    """Apply G independent MLPNets in ONE pallas_call.

    xs:     list of G arrays, each (B, N_g, Cin_g) float32.
    params: list of G dicts with w1 (Cin_g, L), w2 (L, Cout), gamma/beta (Cout,).
    Returns a list of G arrays (B, N_g, Cout) float32.

    Rows of all groups are stacked (each group padded to a multiple of the row
    tile) and the per-tile group id is scalar-prefetched so the BlockSpec
    index_maps pick the right stacked weights / LN params for every tile.
    """
    G = len(xs)
    L = params[0]["w1"].shape[1]           # latent dims
    Cout = params[0]["w2"].shape[1]
    cins = [p["w1"].shape[0] for p in params]
    cin_pad = _round_up(max(cins), 16)     # bf16-friendly sublane/lane padding

    rows = [x.shape[0] * x.shape[1] for x in xs]
    # Size the tile to the real work: multiple of 16, capped for VMEM safety.
    tile_rows = min(tile_cap, _round_up(max(rows), 16))

    blocks, gid_list, offs = [], [], []
    total = 0
    for g, x in enumerate(xs):
        r = rows[g]
        rp = _round_up(r, tile_rows)
        x2 = x.reshape(r, cins[g]).astype(jnp.bfloat16)
        x2 = jnp.pad(x2, ((0, rp - r), (0, cin_pad - cins[g])))
        blocks.append(x2)
        offs.append(total)
        total += rp
        gid_list += [g] * (rp // tile_rows)

    xcat = jnp.concatenate(blocks, axis=0)                  # (Rp_total, cin_pad) bf16
    group_id = jnp.asarray(gid_list, dtype=jnp.int32)       # (n_tiles,) SMEM prefetch
    n_tiles = len(gid_list)

    # Stacked per-group weights (zero-padded Cin rows are harmless: matching
    # input columns are zero too).
    w1 = jnp.stack([jnp.pad(p["w1"], ((0, cin_pad - p["w1"].shape[0]), (0, 0)))
                    for p in params]).astype(jnp.bfloat16)           # (G, cin_pad, L)
    w2 = jnp.stack([p["w2"] for p in params]).astype(jnp.bfloat16)   # (G, L, Cout)
    gamma = jnp.stack([p["gamma"].reshape(1, Cout) for p in params]) # (G, 1, Cout)
    beta = jnp.stack([p["beta"].reshape(1, Cout) for p in params])   # (G, 1, Cout)

    out = pl.pallas_call(
        _grouped_mlp_kernel,
        out_shape=jax.ShapeDtypeStruct((total, Cout), jnp.float32),
        grid_spec=pltpu.PrefetchScalarGridSpec(
            num_scalar_prefetch=1,
            grid=(n_tiles,),
            in_specs=[
                pl.BlockSpec((tile_rows, cin_pad), lambda i, gid: (i, 0)),
                pl.BlockSpec((None, cin_pad, L), lambda i, gid: (gid[i], 0, 0)),
                pl.BlockSpec((None, L, Cout), lambda i, gid: (gid[i], 0, 0)),
                pl.BlockSpec((None, 1, Cout), lambda i, gid: (gid[i], 0, 0)),
                pl.BlockSpec((None, 1, Cout), lambda i, gid: (gid[i], 0, 0)),
            ],
            out_specs=pl.BlockSpec((tile_rows, Cout), lambda i, gid: (i, 0)),
        ),
        compiler_params=pltpu.CompilerParams(
            dimension_semantics=("parallel",)),   # independent row tiles (v7x 2 TCs)
    )(group_id, xcat, w1, w2, gamma, beta)

    outs = []
    for g, x in enumerate(xs):
        B, N = x.shape[0], x.shape[1]
        outs.append(out[offs[g]:offs[g] + rows[g]].reshape(B, N, Cout))
    return outs


# ------------------------- scatter-sum (reduce) kernel -----------------------
def _scatter_kernel(oh_ref, e_ref, o_ref):
    # out[n, :] = sum_e [dst_idx[e] == n] * edge[e, :]   (one-hot^T @ edges, MXU)
    o_ref[...] = jnp.dot(oh_ref[...], e_ref[...],
                         preferred_element_type=jnp.float32)


def scatter_sum_pallas(edge_feats, dst_idx, num_dst):
    """scatter(edge_feats, dst_idx, dim=1, reduce='sum'), zero-padded to num_dst rows."""
    B, E, L = edge_feats.shape
    oh_t = jax.nn.one_hot(dst_idx, num_dst, dtype=jnp.bfloat16).T   # (num_dst, E)
    return pl.pallas_call(
        _scatter_kernel,
        out_shape=jax.ShapeDtypeStruct((B, num_dst, L), jnp.float32),
        grid=(B,),
        in_specs=[
            pl.BlockSpec((num_dst, E), lambda b: (0, 0)),
            pl.BlockSpec((None, E, L), lambda b: (b, 0, 0)),
        ],
        out_specs=pl.BlockSpec((None, num_dst, L), lambda b: (b, 0, 0)),
        compiler_params=pltpu.CompilerParams(
            dimension_semantics=("parallel",)),   # batch axis -> both v7x cores
    )(oh_t, edge_feats.astype(jnp.bfloat16))


# ----------------------------- parameter init --------------------------------
def init_mlp(key, cin, cout, latent):
    k1, k2 = jax.random.split(key)
    # PyTorch Linear stores (out, in); here stored transposed as (in, out).
    w1 = jax.random.normal(k1, (cin, latent), jnp.float32) / jnp.sqrt(float(cin))
    w2 = jax.random.normal(k2, (latent, cout), jnp.float32) / jnp.sqrt(float(latent))
    gamma = jnp.ones((cout,), jnp.float32)   # LayerNorm default weight
    beta = jnp.zeros((cout,), jnp.float32)   # LayerNorm default bias
    return dict(w1=w1, w2=w2, gamma=gamma, beta=beta)


# ----------------------------- Encoder forward --------------------------------
def encoder_forward(params, grid_node, mesh_node, mesh_edge, g2m_edge, m2g_edge,
                    src_idx, dst_idx):
    # --- Embedder: 5 MLPNets fused into ONE pallas_call ---
    vg, vm, em, eg2m, em2g = grouped_mlp(
        [grid_node, mesh_node, mesh_edge, g2m_edge, m2g_edge],
        [params["vg"], params["vm"], params["em"], params["eg2m"], params["em2g"]])

    # --- G2MGnn.InteractionLayer (is_homo=False) ---
    N_m = vm.shape[1]
    src_feats = jnp.take(vg, src_idx, axis=1)          # torch.index_select(dim=1)
    dst_feats = jnp.take(vm, dst_idx, axis=1)
    edge_in = jnp.concatenate([src_feats, dst_feats, eg2m], axis=-1)   # (B, E, 3L)

    # Reference scatters the *embedded* edge feats (eg2m), not the edge_fn
    # output: scatter(edge_feats, dst_idx, dim=1, 'sum'), padded to N_m rows.
    sum_edge = scatter_sum_pallas(eg2m, dst_idx, N_m)
    node_in = jnp.concatenate([vm, sum_edge], axis=-1)                 # (B, N_m, 2L)

    # edge_fn / node_fn / grid_node_mlp fused into ONE pallas_call
    update_edge, update_dst, grid_new = grouped_mlp(
        [edge_in, node_in, vg],
        [params["edge_fn"], params["node_fn"], params["grid_node_mlp"]])

    vm_out = update_dst + vm        # InteractionLayer node residual
    eg2m_out = update_edge + eg2m   # InteractionLayer edge residual
    vg_out = grid_new + vg          # G2MGnn grid-node residual
    return vg_out, vm_out, em, eg2m_out, em2g


# ----------------------------------- main -------------------------------------
if __name__ == "__main__":
    key = jax.random.PRNGKey(0)
    B, N_g, N_m = 2, 16, 8
    E_m, E_g2m, E_m2g = 12, 10, 10
    vg_in, vm_in, em_in, eg2m_in, em2g_in = 6, 5, 4, 4, 4
    L = 32

    keys = jax.random.split(key, 16)
    grid_node = jax.random.normal(keys[0], (B, N_g, vg_in), jnp.float32)
    mesh_node = jax.random.normal(keys[1], (B, N_m, vm_in), jnp.float32)
    mesh_edge = jax.random.normal(keys[2], (B, E_m, em_in), jnp.float32)
    g2m_edge = jax.random.normal(keys[3], (B, E_g2m, eg2m_in), jnp.float32)
    m2g_edge = jax.random.normal(keys[4], (B, E_m2g, em2g_in), jnp.float32)
    src_idx = jax.random.randint(keys[5], (E_g2m,), 0, N_g)
    dst_idx = jax.random.randint(keys[6], (E_g2m,), 0, N_m)

    params = {
        "vg": init_mlp(keys[7], vg_in, L, L),
        "vm": init_mlp(keys[8], vm_in, L, L),
        "em": init_mlp(keys[9], em_in, L, L),
        "eg2m": init_mlp(keys[10], eg2m_in, L, L),
        "em2g": init_mlp(keys[11], em2g_in, L, L),
        "edge_fn": init_mlp(keys[12], 3 * L, L, L),      # in = 2*node + edge
        "node_fn": init_mlp(keys[13], 2 * L, L, L),      # in = node + edge_out
        "grid_node_mlp": init_mlp(keys[14], L, L, L),
    }

    fwd = jax.jit(encoder_forward)
    outs = fwd(params, grid_node, mesh_node, mesh_edge,
               g2m_edge, m2g_edge, src_idx, dst_idx)
    outs = jax.block_until_ready(outs)

    # sanity-check shapes match the PyTorch semantics
    assert outs[0].shape == (B, N_g, L)
    assert outs[1].shape == (B, N_m, L)
    assert outs[2].shape == (B, E_m, L)
    assert outs[3].shape == (B, E_g2m, L)
    assert outs[4].shape == (B, E_m2g, L)
    print("KERNEL_OK")
</pallas_src>

<mosaic_0001>
module attributes {stable_mosaic.version = 11 : i64} {
  func.func @_grouped_mlp_kernel(%arg0: i32, %arg1: memref<5xi32, #tpu.memory_space<smem>>, %arg2: memref<32x16xbf16, #tpu.memory_space<vmem>>, %arg3: memref<1x16x32xbf16, #tpu.memory_space<vmem>>, %arg4: memref<1x32x32xbf16, #tpu.memory_space<vmem>>, %arg5: memref<1x1x32xf32, #tpu.memory_space<vmem>>, %arg6: memref<1x1x32xf32, #tpu.memory_space<vmem>>, %arg7: memref<32x32xf32, #tpu.memory_space<vmem>>) attributes {dimension_semantics = [#tpu.dimension_semantics<parallel>], iteration_bounds = array<i64: 5>, scalar_prefetch = 1 : i64, scratch_operands = 0 : i64, tpu.core_type = #tpu.core_type<tc>, window_params = [{transform_indices = @transform_0, window_bounds = array<i64: 32, 16>}, {transform_indices = @transform_1, window_bounds = array<i64: 1, 16, 32>}, {transform_indices = @transform_2, window_bounds = array<i64: 1, 32, 32>}, {transform_indices = @transform_3, window_bounds = array<i64: 1, 1, 32>}, {transform_indices = @transform_4, window_bounds = array<i64: 1, 1, 32>}, {transform_indices = @transform_5, window_bounds = array<i64: 32, 32>}]} {
    %c0 = arith.constant 0 : index
    %c0_0 = arith.constant 0 : index
    %0 = vector.load %arg2[%c0, %c0_0] : memref<32x16xbf16, #tpu.memory_space<vmem>>, vector<32x16xbf16>
    %c0_1 = arith.constant 0 : index
    %c0_2 = arith.constant 0 : index
    %c0_3 = arith.constant 0 : index
    %1 = vector.load %arg3[%c0_1, %c0_2, %c0_3] : memref<1x16x32xbf16, #tpu.memory_space<vmem>>, vector<1x16x32xbf16>
    %2 = vector.shape_cast %1 : vector<1x16x32xbf16> to vector<16x32xbf16>
    %cst = arith.constant dense<0.000000e+00> : vector<32x32xf32>
    %3 = tpu.matmul %0, %2, %cst {dimension_numbers = #tpu.dot_dimension_numbers<[1], [0], [0], [1], [0, 0, 1, 1], [], []>} : vector<32x16xbf16>, vector<16x32xbf16>, vector<32x32xf32> -> vector<32x32xf32>
    %4 = arith.negf %3 : vector<32x32xf32>
    %5 = math.exp %4 : vector<32x32xf32>
    %cst_4 = arith.constant 1.000000e+00 : f32
    %6 = vector.broadcast %cst_4 : f32 to vector<32x32xf32>
    %7 = arith.addf %6, %5 : vector<32x32xf32>
    %8 = arith.divf %6, %7 : vector<32x32xf32>
    %9 = arith.mulf %3, %8 : vector<32x32xf32>
    %10 = arith.truncf %9 : vector<32x32xf32> to vector<32x32xbf16>
    %c0_5 = arith.constant 0 : index
    %c0_6 = arith.constant 0 : index
    %c0_7 = arith.constant 0 : index
    %11 = vector.load %arg4[%c0_5, %c0_6, %c0_7] : memref<1x32x32xbf16, #tpu.memory_space<vmem>>, vector<1x32x32xbf16>
    %12 = vector.shape_cast %11 : vector<1x32x32xbf16> to vector<32x32xbf16>
    %cst_8 = arith.constant dense<0.000000e+00> : vector<32x32xf32>
    %13 = tpu.matmul %10, %12, %cst_8 {dimension_numbers = #tpu.dot_dimension_numbers<[1], [0], [0], [1], [0, 0, 1, 1], [], []>} : vector<32x32xbf16>, vector<32x32xbf16>, vector<32x32xf32> -> vector<32x32xf32>
    %cst_9 = arith.constant dense<0.000000e+00> : vector<32xf32>
    %14 = vector.multi_reduction <add>, %13, %cst_9 [1] : vector<32x32xf32> to vector<32xf32>
    %15 = vector.shape_cast %14 : vector<32xf32> to vector<32x1xf32>
    %cst_10 = arith.constant 3.200000e+01 : f32
    %16 = vector.broadcast %cst_10 : f32 to vector<32x1xf32>
    %17 = arith.divf %15, %16 : vector<32x1xf32>
    %18 = vector.broadcast %17 : vector<32x1xf32> to vector<32x32xf32>
    %19 = arith.subf %13, %18 : vector<32x32xf32>
    %20 = arith.mulf %19, %19 : vector<32x32xf32>
    %cst_11 = arith.constant dense<0.000000e+00> : vector<32xf32>
    %21 = vector.multi_reduction <add>, %20, %cst_11 [1] : vector<32x32xf32> to vector<32xf32>
    %22 = vector.shape_cast %21 : vector<32xf32> to vector<32x1xf32>
    %cst_12 = arith.constant 3.200000e+01 : f32
    %23 = vector.broadcast %cst_12 : f32 to vector<32x1xf32>
    %24 = arith.divf %22, %23 : vector<32x1xf32>
    %25 = vector.broadcast %17 : vector<32x1xf32> to vector<32x32xf32>
    %26 = arith.subf %13, %25 : vector<32x32xf32>
    %cst_13 = arith.constant 9.99999974E-6 : f32
    %27 = vector.broadcast %cst_13 : f32 to vector<32x1xf32>
    %28 = arith.addf %24, %27 : vector<32x1xf32>
    %29 = math.rsqrt %28 : vector<32x1xf32>
    %30 = vector.broadcast %29 : vector<32x1xf32> to vector<32x32xf32>
    %31 = arith.mulf %26, %30 : vector<32x32xf32>
    %c0_14 = arith.constant 0 : index
    %c0_15 = arith.constant 0 : index
    %c0_16 = arith.constant 0 : index
    %32 = vector.load %arg5[%c0_14, %c0_15, %c0_16] : memref<1x1x32xf32, #tpu.memory_space<vmem>>, vector<1x1x32xf32>
    %33 = vector.shape_cast %32 : vector<1x1x32xf32> to vector<1x32xf32>
    %34 = vector.broadcast %33 : vector<1x32xf32> to vector<32x32xf32>
    %35 = arith.mulf %31, %34 : vector<32x32xf32>
    %c0_17 = arith.constant 0 : index
    %c0_18 = arith.constant 0 : index
    %c0_19 = arith.constant 0 : index
    %36 = vector.load %arg6[%c0_17, %c0_18, %c0_19] : memref<1x1x32xf32, #tpu.memory_space<vmem>>, vector<1x1x32xf32>
    %37 = vector.shape_cast %36 : vector<1x1x32xf32> to vector<1x32xf32>
    %38 = vector.broadcast %37 : vector<1x32xf32> to vector<32x32xf32>
    %39 = arith.addf %35, %38 : vector<32x32xf32>
    %c0_20 = arith.constant 0 : index
    %c0_21 = arith.constant 0 : index
    %40 = vector.load %arg7[%c0_20, %c0_21] : memref<32x32xf32, #tpu.memory_space<vmem>>, vector<32x32xf32>
    tpu.vector_store %arg7[%c0_20, %c0_21], %39 {strides = array<i32>} : memref<32x32xf32, #tpu.memory_space<vmem>>, vector<32x32xf32>,
    return
  }
  func.func @transform_0(%arg0: i32, %arg1: memref<5xi32, #tpu.memory_space<smem>>) -> (i32, i32) {
    %c0_i32 = arith.constant 0 : i32
    %c0_i32_0 = arith.constant 0 : i32
    return %arg0, %c0_i32 : i32, i32
  }
  func.func @transform_1(%arg0: i32, %arg1: memref<5xi32, #tpu.memory_space<smem>>) -> (i32, i32, i32) {
    %0 = arith.index_cast %arg0 : i32 to index
    %1 = memref.load %arg1[%0] : memref<5xi32, #tpu.memory_space<smem>>
    %c0_i32 = arith.constant 0 : i32
    %c0_i32_0 = arith.constant 0 : i32
    %c0_i32_1 = arith.constant 0 : i32
    return %1, %c0_i32, %c0_i32_0 : i32, i32, i32
  }
  func.func @transform_2(%arg0: i32, %arg1: memref<5xi32, #tpu.memory_space<smem>>) -> (i32, i32, i32) {
    %0 = arith.index_cast %arg0 : i32 to index
    %1 = memref.load %arg1[%0] : memref<5xi32, #tpu.memory_space<smem>>
    %c0_i32 = arith.constant 0 : i32
    %c0_i32_0 = arith.constant 0 : i32
    %c0_i32_1 = arith.constant 0 : i32
    return %1, %c0_i32, %c0_i32_0 : i32, i32, i32
  }
  func.func @transform_3(%arg0: i32, %arg1: memref<5xi32, #tpu.memory_space<smem>>) -> (i32, i32, i32) {
    %0 = arith.index_cast %arg0 : i32 to index
    %1 = memref.load %arg1[%0] : memref<5xi32, #tpu.memory_space<smem>>
    %c0_i32 = arith.constant 0 : i32
    %c0_i32_0 = arith.constant 0 : i32
    %c0_i32_1 = arith.constant 0 : i32
    return %1, %c0_i32, %c0_i32_0 : i32, i32, i32
  }
  func.func @transform_4(%arg0: i32, %arg1: memref<5xi32, #tpu.memory_space<smem>>) -> (i32, i32, i32) {
    %0 = arith.index_cast %arg0 : i32 to index
    %1 = memref.load %arg1[%0] : memref<5xi32, #tpu.memory_space<smem>>
    %c0_i32 = arith.constant 0 : i32
    %c0_i32_0 = arith.constant 0 : i32
    %c0_i32_1 = arith.constant 0 : i32
    return %1, %c0_i32, %c0_i32_0 : i32, i32, i32
  }
  func.func @transform_5(%arg0: i32, %arg1: memref<5xi32, #tpu.memory_space<smem>>) -> (i32, i32) {
    %c0_i32 = arith.constant 0 : i32
    %c0_i32_0 = arith.constant 0 : i32
    return %arg0, %c0_i32 : i32, i32
  }
}

module attributes {stable_mosaic.version = 11 : i64} {
  func.func @_scatter_kernel(%arg0: i32, %arg1: memref<8x10xbf16, #tpu.memory_space<vmem>>, %arg2: memref<1x10x32xbf16, #tpu.memory_space<vmem>>, %arg3: memref<1x8x32xf32, #tpu.memory_space<vmem>>) attributes {dimension_semantics = [#tpu.dimension_semantics<parallel>], iteration_bounds = array<i64: 2>, scalar_prefetch = 0 : i64, scratch_operands = 0 : i64, tpu.core_type = #tpu.core_type<tc>, window_params = [{pipeline_mode = #tpu.pipeline_mode<synchronous>, transform_indices = @transform_0, window_bounds = array<i64: 8, 10>}, {transform_indices = @transform_1, window_bounds = array<i64: 1, 10, 32>}, {transform_indices = @transform_2, window_bounds = array<i64: 1, 8, 32>}]} {
    %c0 = arith.constant 0 : index
    %c0_0 = arith.constant 0 : index
    %0 = vector.load %arg1[%c0, %c0_0] : memref<8x10xbf16, #tpu.memory_space<vmem>>, vector<8x10xbf16>
    %c0_1 = arith.constant 0 : index
    %c0_2 = arith.constant 0 : index
    %c0_3 = arith.constant 0 : index
    %1 = vector.load %arg2[%c0_1, %c0_2, %c0_3] : memref<1x10x32xbf16, #tpu.memory_space<vmem>>, vector<1x10x32xbf16>
    %2 = vector.shape_cast %1 : vector<1x10x32xbf16> to vector<10x32xbf16>
    %cst = arith.constant dense<0.000000e+00> : vector<8x32xf32>
    %3 = tpu.matmul %0, %2, %cst {dimension_numbers = #tpu.dot_dimension_numbers<[1], [0], [0], [1], [0, 0, 1, 1], [], []>} : vector<8x10xbf16>, vector<10x32xbf16>, vector<8x32xf32> -> vector<8x32xf32>
    %c0_4 = arith.constant 0 : index
    %c0_5 = arith.constant 0 : index
    %c0_6 = arith.constant 0 : index
    %4 = vector.load %arg3[%c0_4, %c0_5, %c0_6] : memref<1x8x32xf32, #tpu.memory_space<vmem>>, vector<1x8x32xf32>
    %5 = vector.shape_cast %4 : vector<1x8x32xf32> to vector<8x32xf32>
    %6 = vector.shape_cast %3 : vector<8x32xf32> to vector<1x8x32xf32>
    tpu.vector_store %arg3[%c0_4, %c0_5, %c0_6], %6 {strides = array<i32>} : memref<1x8x32xf32, #tpu.memory_space<vmem>>, vector<1x8x32xf32>,
    return
  }
  func.func @transform_0(%arg0: i32) -> (i32, i32) {
    %c0_i32 = arith.constant 0 : i32
    %c0_i32_0 = arith.constant 0 : i32
    %c0_i32_1 = arith.constant 0 : i32
    return %c0_i32, %c0_i32_0 : i32, i32
  }
  func.func @transform_1(%arg0: i32) -> (i32, i32, i32) {
    %c0_i32 = arith.constant 0 : i32
    %c0_i32_0 = arith.constant 0 : i32
    %c0_i32_1 = arith.constant 0 : i32
    return %arg0, %c0_i32, %c0_i32_0 : i32, i32, i32
  }
  func.func @transform_2(%arg0: i32) -> (i32, i32, i32) {
    %c0_i32 = arith.constant 0 : i32
    %c0_i32_0 = arith.constant 0 : i32
    %c0_i32_1 = arith.constant 0 : i32
    return %arg0, %c0_i32, %c0_i32_0 : i32, i32, i32
  }
}

module attributes {stable_mosaic.version = 11 : i64} {
  func.func @_grouped_mlp_kernel(%arg0: i32, %arg1: memref<3xi32, #tpu.memory_space<smem>>, %arg2: memref<32x96xbf16, #tpu.memory_space<vmem>>, %arg3: memref<1x96x32xbf16, #tpu.memory_space<vmem>>, %arg4: memref<1x32x32xbf16, #tpu.memory_space<vmem>>, %arg5: memref<1x1x32xf32, #tpu.memory_space<vmem>>, %arg6: memref<1x1x32xf32, #tpu.memory_space<vmem>>, %arg7: memref<32x32xf32, #tpu.memory_space<vmem>>) attributes {dimension_semantics = [#tpu.dimension_semantics<parallel>], iteration_bounds = array<i64: 3>, scalar_prefetch = 1 : i64, scratch_operands = 0 : i64, tpu.core_type = #tpu.core_type<tc>, window_params = [{transform_indices = @transform_0, window_bounds = array<i64: 32, 96>}, {transform_indices = @transform_1, window_bounds = array<i64: 1, 96, 32>}, {transform_indices = @transform_2, window_bounds = array<i64: 1, 32, 32>}, {transform_indices = @transform_3, window_bounds = array<i64: 1, 1, 32>}, {transform_indices = @transform_4, window_bounds = array<i64: 1, 1, 32>}, {transform_indices = @transform_5, window_bounds = array<i64: 32, 32>}]} {
    %c0 = arith.constant 0 : index
    %c0_0 = arith.constant 0 : index
    %0 = vector.load %arg2[%c0, %c0_0] : memref<32x96xbf16, #tpu.memory_space<vmem>>, vector<32x96xbf16>
    %c0_1 = arith.constant 0 : index
    %c0_2 = arith.constant 0 : index
    %c0_3 = arith.constant 0 : index
    %1 = vector.load %arg3[%c0_1, %c0_2, %c0_3] : memref<1x96x32xbf16, #tpu.memory_space<vmem>>, vector<1x96x32xbf16>
    %2 = vector.shape_cast %1 : vector<1x96x32xbf16> to vector<96x32xbf16>
    %cst = arith.constant dense<0.000000e+00> : vector<32x32xf32>
    %3 = tpu.matmul %0, %2, %cst {dimension_numbers = #tpu.dot_dimension_numbers<[1], [0], [0], [1], [0, 0, 1, 1], [], []>} : vector<32x96xbf16>, vector<96x32xbf16>, vector<32x32xf32> -> vector<32x32xf32>
    %4 = arith.negf %3 : vector<32x32xf32>
    %5 = math.exp %4 : vector<32x32xf32>
    %cst_4 = arith.constant 1.000000e+00 : f32
    %6 = vector.broadcast %cst_4 : f32 to vector<32x32xf32>
    %7 = arith.addf %6, %5 : vector<32x32xf32>
    %8 = arith.divf %6, %7 : vector<32x32xf32>
    %9 = arith.mulf %3, %8 : vector<32x32xf32>
    %10 = arith.truncf %9 : vector<32x32xf32> to vector<32x32xbf16>
    %c0_5 = arith.constant 0 : index
    %c0_6 = arith.constant 0 : index
    %c0_7 = arith.constant 0 : index
    %11 = vector.load %arg4[%c0_5, %c0_6, %c0_7] : memref<1x32x32xbf16, #tpu.memory_space<vmem>>, vector<1x32x32xbf16>
    %12 = vector.shape_cast %11 : vector<1x32x32xbf16> to vector<32x32xbf16>
    %cst_8 = arith.constant dense<0.000000e+00> : vector<32x32xf32>
    %13 = tpu.matmul %10, %12, %cst_8 {dimension_numbers = #tpu.dot_dimension_numbers<[1], [0], [0], [1], [0, 0, 1, 1], [], []>} : vector<32x32xbf16>, vector<32x32xbf16>, vector<32x32xf32> -> vector<32x32xf32>
    %cst_9 = arith.constant dense<0.000000e+00> : vector<32xf32>
    %14 = vector.multi_reduction <add>, %13, %cst_9 [1] : vector<32x32xf32> to vector<32xf32>
    %15 = vector.shape_cast %14 : vector<32xf32> to vector<32x1xf32>
    %cst_10 = arith.constant 3.200000e+01 : f32
    %16 = vector.broadcast %cst_10 : f32 to vector<32x1xf32>
    %17 = arith.divf %15, %16 : vector<32x1xf32>
    %18 = vector.broadcast %17 : vector<32x1xf32> to vector<32x32xf32>
    %19 = arith.subf %13, %18 : vector<32x32xf32>
    %20 = arith.mulf %19, %19 : vector<32x32xf32>
    %cst_11 = arith.constant dense<0.000000e+00> : vector<32xf32>
    %21 = vector.multi_reduction <add>, %20, %cst_11 [1] : vector<32x32xf32> to vector<32xf32>
    %22 = vector.shape_cast %21 : vector<32xf32> to vector<32x1xf32>
    %cst_12 = arith.constant 3.200000e+01 : f32
    %23 = vector.broadcast %cst_12 : f32 to vector<32x1xf32>
    %24 = arith.divf %22, %23 : vector<32x1xf32>
    %25 = vector.broadcast %17 : vector<32x1xf32> to vector<32x32xf32>
    %26 = arith.subf %13, %25 : vector<32x32xf32>
    %cst_13 = arith.constant 9.99999974E-6 : f32
    %27 = vector.broadcast %cst_13 : f32 to vector<32x1xf32>
    %28 = arith.addf %24, %27 : vector<32x1xf32>
    %29 = math.rsqrt %28 : vector<32x1xf32>
    %30 = vector.broadcast %29 : vector<32x1xf32> to vector<32x32xf32>
    %31 = arith.mulf %26, %30 : vector<32x32xf32>
    %c0_14 = arith.constant 0 : index
    %c0_15 = arith.constant 0 : index
    %c0_16 = arith.constant 0 : index
    %32 = vector.load %arg5[%c0_14, %c0_15, %c0_16] : memref<1x1x32xf32, #tpu.memory_space<vmem>>, vector<1x1x32xf32>
    %33 = vector.shape_cast %32 : vector<1x1x32xf32> to vector<1x32xf32>
    %34 = vector.broadcast %33 : vector<1x32xf32> to vector<32x32xf32>
    %35 = arith.mulf %31, %34 : vector<32x32xf32>
    %c0_17 = arith.constant 0 : index
    %c0_18 = arith.constant 0 : index
    %c0_19 = arith.constant 0 : index
    %36 = vector.load %arg6[%c0_17, %c0_18, %c0_19] : memref<1x1x32xf32, #tpu.memory_space<vmem>>, vector<1x1x32xf32>
    %37 = vector.shape_cast %36 : vector<1x1x32xf32> to vector<1x32xf32>
    %38 = vector.broadcast %37 : vector<1x32xf32> to vector<32x32xf32>
    %39 = arith.addf %35, %38 : vector<32x32xf32>
    %c0_20 = arith.constant 0 : index
    %c0_21 = arith.constant 0 : index
    %40 = vector.load %arg7[%c0_20, %c0_21] : memref<32x32xf32, #tpu.memory_space<vmem>>, vector<32x32xf32>
    tpu.vector_store %arg7[%c0_20, %c0_21], %39 {strides = array<i32>} : memref<32x32xf32, #tpu.memory_space<vmem>>, vector<32x32xf32>,
    return
  }
  func.func @transform_0(%arg0: i32, %arg1: memref<3xi32, #tpu.memory_space<smem>>) -> (i32, i32) {
    %c0_i32 = arith.constant 0 : i32
    %c0_i32_0 = arith.constant 0 : i32
    return %arg0, %c0_i32 : i32, i32
  }
  func.func @transform_1(%arg0: i32, %arg1: memref<3xi32, #tpu.memory_space<smem>>) -> (i32, i32, i32) {
    %0 = arith.index_cast %arg0 : i32 to index
    %1 = memref.load %arg1[%0] : memref<3xi32, #tpu.memory_space<smem>>
    %c0_i32 = arith.constant 0 : i32
    %c0_i32_0 = arith.constant 0 : i32
    %c0_i32_1 = arith.constant 0 : i32
    return %1, %c0_i32, %c0_i32_0 : i32, i32, i32
  }
  func.func @transform_2(%arg0: i32, %arg1: memref<3xi32, #tpu.memory_space<smem>>) -> (i32, i32, i32) {
    %0 = arith.index_cast %arg0 : i32 to index
    %1 = memref.load %arg1[%0] : memref<3xi32, #tpu.memory_space<smem>>
    %c0_i32 = arith.constant 0 : i32
    %c0_i32_0 = arith.constant 0 : i32
    %c0_i32_1 = arith.constant 0 : i32
    return %1, %c0_i32, %c0_i32_0 : i32, i32, i32
  }
  func.func @transform_3(%arg0: i32, %arg1: memref<3xi32, #tpu.memory_space<smem>>) -> (i32, i32, i32) {
    %0 = arith.index_cast %arg0 : i32 to index
    %1 = memref.load %arg1[%0] : memref<3xi32, #tpu.memory_space<smem>>
    %c0_i32 = arith.constant 0 : i32
    %c0_i32_0 = arith.constant 0 : i32
    %c0_i32_1 = arith.constant 0 : i32
    return %1, %c0_i32, %c0_i32_0 : i32, i32, i32
  }
  func.func @transform_4(%arg0: i32, %arg1: memref<3xi32, #tpu.memory_space<smem>>) -> (i32, i32, i32) {
    %0 = arith.index_cast %arg0 : i32 to index
    %1 = memref.load %arg1[%0] : memref<3xi32, #tpu.memory_space<smem>>
    %c0_i32 = arith.constant 0 : i32
    %c0_i32_0 = arith.constant 0 : i32
    %c0_i32_1 = arith.constant 0 : i32
    return %1, %c0_i32, %c0_i32_0 : i32, i32, i32
  }
  func.func @transform_5(%arg0: i32, %arg1: memref<3xi32, #tpu.memory_space<smem>>) -> (i32, i32) {
    %c0_i32 = arith.constant 0 : i32
    %c0_i32_0 = arith.constant 0 : i32
    return %arg0, %c0_i32 : i32, i32
  }
}

</mosaic_0001>

<llo_original>
// kernel: encoder_forward.3
$region0: #{encoder_forward.3}
  #allocation0 [shape = 'u32[]', space=smem, size = 0x4, offset = 0x4, fixed_abs, tag = 'smem constant byte address 0x4 - core index']
  #allocation1 [shape = 'u32[72,128]{1,0:T(1,128)}', space=vmem, size = 0x9000, scoped, tag = 'internal scratch']
  #allocation2 [shape = 's32[1]{0}', space=sflag, size = 0x4, scoped, tag = 'scoped memory for encoder_forward.3']
  #allocation3 [shape = 'u8[512]{0}', space=smem, size = 0x200, scoped, tag = 'prefetched SMEM operand 0']
  %s0 = inlined_call_operand.vmem [shape: s32[5], index: 0, kind: input, shape index: {}]
  %s1 = inlined_call_operand.vmem [shape: bf16[160,16], index: 1, kind: input, shape index: {}]
  %s2 = inlined_call_operand.vmem [shape: bf16[5,16,32], index: 2, kind: input, shape index: {}]
  %s3 = inlined_call_operand.vmem [shape: bf16[5,32,32], index: 3, kind: input, shape index: {}]
  %s4 = inlined_call_operand.vmem [shape: f32[5,1,32], index: 4, kind: input, shape index: {}]
  %s5 = inlined_call_operand.vmem [shape: f32[5,1,32], index: 5, kind: input, shape index: {}]
  %s6 = inlined_call_operand.vmem [shape: f32[160,32], index: 6, kind: output, shape index: {}]
  %s7 = sld [smem:[#allocation0]]
  $region53: #{encoder_forward.3} parent=0
    _
  %s9 = ssub.s32 1, %s7
  %s10 = scalar_select 0, %s9, %s7
  %s12 = sshll.u32 %s0, 4
  %s13 = int_to_ptr.vmem [resolvable:$true] %s12
  %15 = dma.vmem_to_smem %s13, 16, [#allocation3], [#allocation2]
  %17 = dma.done [#allocation2], 16
  %18 = sfence
  loop: start=0, step=1, limit=7
  $region2: #{encoder_forward.3} parent=0 // loop_pre_header
    _
  $region3: #{encoder_forward.3} parent=0 // loop_header
    %s20 = sphi 0, %s24
    %p21 = scmp.ge.s32.totalorder %s20, 7
    %s30 = sphi 0, %s32
    %s33 = sphi 0, %s30
    %s34 = sphi 0, %s33
    %s50 = sphi 0, %s34
    %s58 = sphi 0, %s60
    %s61 = sphi 0, %s58
    %s62 = sphi 0, %s61
    %s78 = sphi 0, %s62
    %s86 = sphi 0, %s88
    %s89 = sphi 0, %s86
    %s90 = sphi 0, %s89
    %s106 = sphi 0, %s90
    %s114 = sphi 0, %s116
    %s117 = sphi 0, %s114
    %s118 = sphi 0, %s117
    %s134 = sphi 0, %s118
    %s142 = sphi 0, %s144
    %s145 = sphi 0, %s142
    %s146 = sphi 0, %s145
    %s162 = sphi 0, %s146
    %s168 = sphi 0, %s170
    %s171 = sphi 0, %s168
    %s172 = sphi 0, %s171
    %s188 = sphi 0, %s172
  $region4: #{encoder_forward.3} parent=0 // loop_header_branch
    %23 = sbr.rel (%p21) target = $region8
  $region5: #{encoder_forward.3} parent=0 // loop_body
    %s25 = ssub.s32 %s20, 1
    %s26 = ssub.s32 %s20, 2
    %s27 = sadd.s32 %s20, 1
    %s28 = ssub.s32 %s20, %s27
    %p29 = scmp.eq.s32.totalorder %s28, 0
    %s31 = sadd.s32 %s30, 1
    %s32 = scalar_select %p29, %s30, %s31
    %p35 = pneg %p29
    %p36 = scmp.eq.s32.totalorder %s20, 4
    %p37 = por %p35, %p36
    %p38 = scmp.ne.s32.totalorder %s30, %s33
    %p39 = scmp.eq.s32.totalorder %s20, 0
    %p40 = por %p38, %p39
    %p41 = scmp.ne.s32.totalorder %s30, %s33
    %p42 = scmp.eq.s32.totalorder %s25, 4
    %p43 = por %p41, %p42
    %p44 = scmp.ne.s32.totalorder %s33, %s34
    %p45 = scmp.eq.s32.totalorder %s25, 0
    %p46 = por %p44, %p45
    %p47 = scmp.ne.s32.totalorder %s33, %s34
    %p48 = scmp.eq.s32.totalorder %s26, 4
    %p49 = por %p47, %p48
    %p51 = scmp.ne.s32.totalorder %s34, %s50
    %p52 = scmp.eq.s32.totalorder %s26, 0
    %p53 = por %p51, %p52
    %s54 = sld [smem:[#allocation3 + %s20]]
    %s55 = sld [smem:[#allocation3 + %s27]]
    %s56 = ssub.s32 %s54, %s55
    %p57 = scmp.eq.s32.totalorder %s56, 0
    %s59 = sadd.s32 %s58, 1
    %s60 = scalar_select %p57, %s58, %s59
    %p63 = pneg %p57
    %p64 = scmp.eq.s32.totalorder %s20, 4
    %p65 = por %p63, %p64
    %p66 = scmp.ne.s32.totalorder %s58, %s61
    %p67 = scmp.eq.s32.totalorder %s20, 0
    %p68 = por %p66, %p67
    %p69 = scmp.ne.s32.totalorder %s58, %s61
    %p70 = scmp.eq.s32.totalorder %s25, 4
    %p71 = por %p69, %p70
    %p72 = scmp.ne.s32.totalorder %s61, %s62
    %p73 = scmp.eq.s32.totalorder %s25, 0
    %p74 = por %p72, %p73
    %p75 = scmp.ne.s32.totalorder %s61, %s62
    %p76 = scmp.eq.s32.totalorder %s26, 4
    %p77 = por %p75, %p76
    %p79 = scmp.ne.s32.totalorder %s62, %s78
    %p80 = scmp.eq.s32.totalorder %s26, 0
    %p81 = por %p79, %p80
    %s82 = sld [smem:[#allocation3 + %s20]]
    %s83 = sld [smem:[#allocation3 + %s27]]
    %s84 = ssub.s32 %s82, %s83
    %p85 = scmp.eq.s32.totalorder %s84, 0
    %s87 = sadd.s32 %s86, 1
    %s88 = scalar_select %p85, %s86, %s87
    %p91 = pneg %p85
    %p92 = scmp.eq.s32.totalorder %s20, 4
    %p93 = por %p91, %p92
    %p94 = scmp.ne.s32.totalorder %s86, %s89
    %p95 = scmp.eq.s32.totalorder %s20, 0
    %p96 = por %p94, %p95
    %p97 = scmp.ne.s32.totalorder %s86, %s89
    %p98 = scmp.eq.s32.totalorder %s25, 4
    %p99 = por %p97, %p98
    %p100 = scmp.ne.s32.totalorder %s89, %s90
    %p101 = scmp.eq.s32.totalorder %s25, 0
    %p102 = por %p100, %p101
    %p103 = scmp.ne.s32.totalorder %s89, %s90
    %p104 = scmp.eq.s32.totalorder %s26, 4
    %p105 = por %p103, %p104
    %p107 = scmp.ne.s32.totalorder %s90, %s106
    %p108 = scmp.eq.s32.totalorder %s26, 0
    %p109 = por %p107, %p108
    %s110 = sld [smem:[#allocation3 + %s20]]
    %s111 = sld [smem:[#allocation3 + %s27]]
    %s112 = ssub.s32 %s110, %s111
    %p113 = scmp.eq.s32.totalorder %s112, 0
    %s115 = sadd.s32 %s114, 1
    %s116 = scalar_select %p113, %s114, %s115
    %p119 = pneg %p113
    %p120 = scmp.eq.s32.totalorder %s20, 4
    %p121 = por %p119, %p120
    %p122 = scmp.ne.s32.totalorder %s114, %s117
    %p123 = scmp.eq.s32.totalorder %s20, 0
    %p124 = por %p122, %p123
    %p125 = scmp.ne.s32.totalorder %s114, %s117
    %p126 = scmp.eq.s32.totalorder %s25, 4
    %p127 = por %p125, %p126
    %p128 = scmp.ne.s32.totalorder %s117, %s118
    %p129 = scmp.eq.s32.totalorder %s25, 0
    %p130 = por %p128, %p129
    %p131 = scmp.ne.s32.totalorder %s117, %s118
    %p132 = scmp.eq.s32.totalorder %s26, 4
    %p133 = por %p131, %p132
    %p135 = scmp.ne.s32.totalorder %s118, %s134
    %p136 = scmp.eq.s32.totalorder %s26, 0
    %p137 = por %p135, %p136
    %s138 = sld [smem:[#allocation3 + %s20]]
    %s139 = sld [smem:[#allocation3 + %s27]]
    %s140 = ssub.s32 %s138, %s139
    %p141 = scmp.eq.s32.totalorder %s140, 0
    %s143 = sadd.s32 %s142, 1
    %s144 = scalar_select %p141, %s142, %s143
    %p147 = pneg %p141
    %p148 = scmp.eq.s32.totalorder %s20, 4
    %p149 = por %p147, %p148
    %p150 = scmp.ne.s32.totalorder %s142, %s145
    %p151 = scmp.eq.s32.totalorder %s20, 0
    %p152 = por %p150, %p151
    %p153 = scmp.ne.s32.totalorder %s142, %s145
    %p154 = scmp.eq.s32.totalorder %s25, 4
    %p155 = por %p153, %p154
    %p156 = scmp.ne.s32.totalorder %s145, %s146
    %p157 = scmp.eq.s32.totalorder %s25, 0
    %p158 = por %p156, %p157
    %p159 = scmp.ne.s32.totalorder %s145, %s146
    %p160 = scmp.eq.s32.totalorder %s26, 4
    %p161 = por %p159, %p160
    %p163 = scmp.ne.s32.totalorder %s146, %s162
    %p164 = scmp.eq.s32.totalorder %s26, 0
    %p165 = por %p163, %p164
    %s166 = ssub.s32 %s20, %s27
    %p167 = scmp.eq.s32.totalorder %s166, 0
    %s169 = sadd.s32 %s168, 1
    %s170 = scalar_select %p167, %s168, %s169
    %p173 = pneg %p167
    %p174 = scmp.eq.s32.totalorder %s20, 4
    %p175 = por %p173, %p174
    %p176 = scmp.ne.s32.totalorder %s168, %s171
    %p177 = scmp.eq.s32.totalorder %s20, 0
    %p178 = por %p176, %p177
    %p179 = scmp.ne.s32.totalorder %s168, %s171
    %p180 = scmp.eq.s32.totalorder %s25, 4
    %p181 = por %p179, %p180
    %p182 = scmp.ne.s32.totalorder %s171, %s172
    %p183 = scmp.eq.s32.totalorder %s25, 0
    %p184 = por %p182, %p183
    %p185 = scmp.ne.s32.totalorder %s171, %s172
    %p186 = scmp.eq.s32.totalorder %s26, 4
    %p187 = por %p185, %p186
    %p189 = scmp.ne.s32.totalorder %s172, %s188
    %p190 = scmp.eq.s32.totalorder %s26, 0
    %p191 = por %p189, %p190
    %p192 = scmp.le.s32.totalorder 1, %s20
    %p193 = scmp.lt.s32.totalorder %s20, 6
    %p194 = pnand %p192, %p193
    %p195 = pneg %p194
    // Predicated region
    $region9: #{encoder_forward.3} parent=5 // pred_check
      _
    $region10: #{encoder_forward.3} parent=5 // pred_check_branch
      %197 = sbr.rel (%p194) target = $region12
    $region11: #{encoder_forward.3} parent=5 // pred_region
      %s198 = ssub.s32 %s20, 1
    $region12: #{encoder_forward.3} parent=5 // pred_fallthru
      _
    %p199 = scmp.lt.s32.totalorder %s20, 5
    // Predicated region
    $region13: #{encoder_forward.3} parent=5 // pred_check
      %p200 = pneg %p199
    $region14: #{encoder_forward.3} parent=5 // pred_check_branch
      %202 = sbr.rel (%p200) target = $region16
    $region15: #{encoder_forward.3} parent=5 // pred_region
      // Predicated region
      $region17: #{encoder_forward.3} parent=15 // pred_check
        %p203 = pneg %p40
      $region18: #{encoder_forward.3} parent=15 // pred_check_branch
        %205 = sbr.rel (%p203) target = $region20
      $region19: #{encoder_forward.3} parent=15 // pred_region
        %s206 = smul.u32 4, %s20
        %p207 = scmp.lt.s32.totalorder %s206, 19
        %s208 = scalar_select %p207, %s206, 19
        %s209 = smul.addr %s208, 4
        %s210 = scalar_lea.vmem %s1, %s209
        %s211 = smul.u32 4, %s20
      $region20: #{encoder_forward.3} parent=15 // pred_fallthru
        _
      // Predicated region
      $region21: #{encoder_forward.3} parent=15 // pred_check
        %p212 = pneg %p68
      $region22: #{encoder_forward.3} parent=15 // pred_check_branch
        %214 = sbr.rel (%p212) target = $region24
      $region23: #{encoder_forward.3} parent=15 // pred_region
        %s215 = sld [smem:[#allocation3 + %s20]]
        %p216 = scmp.lt.s32.totalorder %s215, 4
        %s217 = scalar_select %p216, %s215, 4
        %s218 = smul.addr %s217, 2
        %s219 = smul.addr %s218, 4
        %s220 = scalar_lea.vmem %s2, %s219
        %s221 = sld [smem:[#allocation3 + %s20]]
      $region24: #{encoder_forward.3} parent=15 // pred_fallthru
        _
      // Predicated region
      $region25: #{encoder_forward.3} parent=15 // pred_check
        %p222 = pneg %p96
      $region26: #{encoder_forward.3} parent=15 // pred_check_branch
        %224 = sbr.rel (%p222) target = $region28
      $region27: #{encoder_forward.3} parent=15 // pred_region
        %s225 = sld [smem:[#allocation3 + %s20]]
        %p226 = scmp.lt.s32.totalorder %s225, 4
        %s227 = scalar_select %p226, %s225, 4
        %s228 = smul.addr %s227, 4
        %s229 = smul.addr %s228, 4
        %s230 = scalar_lea.vmem %s3, %s229
        %s231 = sld [smem:[#allocation3 + %s20]]
      $region28: #{encoder_forward.3} parent=15 // pred_fallthru
        _
      // Predicated region
      $region29: #{encoder_forward.3} parent=15 // pred_check
        %p232 = pneg %p124
      $region30: #{encoder_forward.3} parent=15 // pred_check_branch
        %234 = sbr.rel (%p232) target = $region32
      $region31: #{encoder_forward.3} parent=15 // pred_region
        %s235 = sld [smem:[#allocation3 + %s20]]
        %p236 = scmp.lt.s32.totalorder %s235, 4
        %s237 = scalar_select %p236, %s235, 4
        %s238 = scalar_lea.vmem %s4, %s237
        %s239 = sld [smem:[#allocation3 + %s20]]
      $region32: #{encoder_forward.3} parent=15 // pred_fallthru
        _
      // Predicated region
      $region33: #{encoder_forward.3} parent=15 // pred_check
        %p240 = pneg %p152
      $region34: #{encoder_forward.3} parent=15 // pred_check_branch
        %242 = sbr.rel (%p240) target = $region36
      $region35: #{encoder_forward.3} parent=15 // pred_region
        %s243 = sld [smem:[#allocation3 + %s20]]
        %p244 = scmp.lt.s32.totalorder %s243, 4
        %s245 = scalar_select %p244, %s243, 4
        %s246 = scalar_lea.vmem %s5, %s245
        %s247 = sld [smem:[#allocation3 + %s20]]
      $region36: #{encoder_forward.3} parent=15 // pred_fallthru
        _
    $region16: #{encoder_forward.3} parent=5 // pred_fallthru
      _
    %p248 = scmp.le.s32.totalorder 1, %s20
    %p249 = scmp.lt.s32.totalorder %s20, 6
    %p250 = pnand %p248, %p249
    %p251 = pneg %p250
    // Predicated region
    $region37: #{encoder_forward.3} parent=5 // pred_check
      _
    $region38: #{encoder_forward.3} parent=5 // pred_check_branch
      %253 = sbr.rel (%p250) target = $region40
    $region39: #{encoder_forward.3} parent=5 // pred_region
      %s254 = ssub.s32 %s20, 1
      %s255 = smul.u32 4, %s25
      %p256 = scmp.lt.s32.totalorder %s255, 19
      %s257 = scalar_select %p256, %s255, 19
      %s258 = smul.addr %s257, 4
      %s259 = scalar_lea.vmem %s1, %s258
      %p260 = pneg %p46
      %p261 = pneg %p43
      %s262 = sld [smem:[#allocation3 + %s25]]
      %p263 = scmp.lt.s32.totalorder %s262, 4
      %s264 = scalar_select %p263, %s262, 4
      %s265 = smul.addr %s264, 2
      %s266 = smul.addr %s265, 4
      %s267 = scalar_lea.vmem %s2, %s266
      %p268 = pneg %p74
      %p269 = pneg %p71
      %s270 = sld [smem:[#allocation3 + %s25]]
      %p271 = scmp.lt.s32.totalorder %s270, 4
      %s272 = scalar_select %p271, %s270, 4
      %s273 = smul.addr %s272, 4
      %s274 = smul.addr %s273, 4
      %s275 = scalar_lea.vmem %s3, %s274
      %p276 = pneg %p102
      %p277 = pneg %p99
      %s278 = sld [smem:[#allocation3 + %s25]]
      %p279 = scmp.lt.s32.totalorder %s278, 4
      %s280 = scalar_select %p279, %s278, 4
      %s281 = scalar_lea.vmem %s4, %s280
      %p282 = pneg %p130
      %p283 = pneg %p127
      %s284 = sld [smem:[#allocation3 + %s25]]
      %p285 = scmp.lt.s32.totalorder %s284, 4
      %s286 = scalar_select %p285, %s284, 4
      %s287 = scalar_lea.vmem %s5, %s286
      %p288 = pneg %p158
      %p289 = pneg %p155
      %p290 = pneg %p184
      %p291 = pneg %p181
      %s292 = smul.u32 4, %s25
      %p293 = scmp.lt.s32.totalorder %s292, 19
      %s294 = scalar_select %p293, %s292, 19
      %s295 = smul.addr %s294, 8
      %s296 = scalar_lea.vmem %s6, %s295
      %s297 = smul.u32 4, %s25
      %p298 = scmp.lt.s32.totalorder %s297, 19
      %s299 = scalar_select %p298, %s297, 19
      %s300 = smul.addr %s299, 4
      %s301 = scalar_lea.vmem %s1, %s300
      %s302 = smul.u32 4, %s25
      %s303 = sld [smem:[#allocation3 + %s25]]
      %p304 = scmp.lt.s32.totalorder %s303, 4
      %s305 = scalar_select %p304, %s303, 4
      %s306 = smul.addr %s305, 2
      %s307 = smul.addr %s306, 4
      %s308 = scalar_lea.vmem %s2, %s307
      %s309 = sld [smem:[#allocation3 + %s25]]
      %s310 = sld [smem:[#allocation3 + %s25]]
      %p311 = scmp.lt.s32.totalorder %s310, 4
      %s312 = scalar_select %p311, %s310, 4
      %s313 = smul.addr %s312, 4
      %s314 = smul.addr %s313, 4
      %s315 = scalar_lea.vmem %s3, %s314
      %s316 = sld [smem:[#allocation3 + %s25]]
      %s317 = sld [smem:[#allocation3 + %s25]]
      %p318 = scmp.lt.s32.totalorder %s317, 4
      %s319 = scalar_select %p318, %s317, 4
      %s320 = scalar_lea.vmem %s4, %s319
      %s321 = sld [smem:[#allocation3 + %s25]]
      %s322 = sld [smem:[#allocation3 + %s25]]
      %p323 = scmp.lt.s32.totalorder %s322, 4
      %s324 = scalar_select %p323, %s322, 4
      %s325 = scalar_lea.vmem %s5, %s324
      %s326 = sld [smem:[#allocation3 + %s25]]
      %s327 = smul.u32 4, %s25
      %p328 = scmp.lt.s32.totalorder %s327, 19
      %s329 = scalar_select %p328, %s327, 19
      %s330 = smul.addr %s329, 8
      %s331 = scalar_lea.vmem %s6, %s330
      %s332 = smul.u32 4, %s25
      %v334 = vld [vmem:[%s301] sm:$0xf]
      %v335 = vld [vmem:[%s301 + $0x4] sm:$0xf]
      %v336 = vld [vmem:[%s301 + $0x8] sm:$0xf]
      %v337 = vld [vmem:[%s301 + $0xc] sm:$0xf]
      %v338 = vld [vmem:[%s308] sm:$0xf]
      %v339 = vld [vmem:[%s308 + $0x4] sm:$0xf]
      %v344 = vunpack.c.l.b16 %v334
      %v345 = vunpack.c.l.b16 %v335
      %v346 = vunpack.c.l.b16 %v336
      %v347 = vunpack.c.l.b16 %v337
      %v348 = vpack.c.b16 %v345, %v344
      %v349 = vpack.c.b16 %v347, %v346
      %v352 = vunpack.c.l.b16 %v338
      %v353 = vunpack.c.l.b16 %v339
      %v354 = vpack.c.b16 %v353, %v352
      %vm356 = vcmask 130048
      %v358 = vsel %vm356, %v348, 0
      %v361 = vsel %vm356, %v349, 0
      %363 = vmatpush.bf16.msra.mxu0 0
      %364 = vmatpush.bf16.msra.mxu0 0
      %365 = vmatpush.bf16.msra.mxu0 0
      %366 = vmatpush.bf16.msra.mxu0 0
      %367 = vmatpush.bf16.msra.mxu0 0
      %368 = vmatpush.bf16.msra.mxu0 0
      %369 = vmatpush.bf16.msra.mxu0 0
      %370 = vmatpush.bf16.msra.mxu0 %v354
      %371 = vmatmul.bf16.gmra.mxu0 %v358
      %v372 = vpop.f32.mrf.mxu0
      %v373 = vadd.f32 0.0, %v372
      %v374 = vpop.f32.mrf.mxu0
      %v375 = vadd.f32 0.0, %v374
      %376 = vmatmul.bf16.gmra.mxu0 %v361
      %v377 = vpop.f32.mrf.mxu0
      %v378 = vadd.f32 0.0, %v377
      %v379 = vpop.f32.mrf.mxu0
      %v380 = vadd.f32 0.0, %v379
      %381 = vdwg.mxu0
      %v382 = vxor.u32 %v373, 2147483648
      %v383 = vxor.u32 %v375, 2147483648
      %v384 = vxor.u32 %v378, 2147483648
      %v385 = vxor.u32 %v380, 2147483648
      %v386 = vmul.f32 %v382, 1.442695
      %v387 = vpow.pop %v386
      %v388 = vmul.f32 %v383, 1.442695
      %v389 = vpow.pop %v388
      %v390 = vmul.f32 %v384, 1.442695
      %v391 = vpow.pop %v390
      %v392 = vmul.f32 %v385, 1.442695
      %v393 = vpow.pop %v392
      %v394 = vadd.f32 %v387, 1.0
      %v395 = vadd.f32 %v389, 1.0
      %v396 = vadd.f32 %v391, 1.0
      %v397 = vadd.f32 %v393, 1.0
      %v398 = vrcp.pop %v394
      %v399 = vmul.f32 %v394, %v398
      %v400 = vsub.f32 1.0, %v399
      %v401 = vmul.f32 %v398, %v400
      %v402 = vadd.f32 %v398, %v401
      %vm403 = vweird.f32 %v394
      %vm404 = vweird.f32 %v398
      %vm405 = vmor %vm403, %vm404
      %v406 = vsel %vm405, %v398, %v402
      %v407 = vand.u32 2147483647, %v394
      %vm408 = vcmp.eq.f32.partialorder %v407, 8.507059e+37
      %v409 = vand.u32 %v394, 2147483648
      %v410 = vor.u32 1.1754944e-38, %v409
      %v411 = vsel %vm408, %v410, %v406
      %v412 = vmul.f32 1.0, %v411
      %v413 = vrcp.pop %v395
      %v414 = vmul.f32 %v395, %v413
      %v415 = vsub.f32 1.0, %v414
      %v416 = vmul.f32 %v413, %v415
      %v417 = vadd.f32 %v413, %v416
      %vm418 = vweird.f32 %v395
      %vm419 = vweird.f32 %v413
      %vm420 = vmor %vm418, %vm419
      %v421 = vsel %vm420, %v413, %v417
      %v422 = vand.u32 2147483647, %v395
      %vm423 = vcmp.eq.f32.partialorder %v422, 8.507059e+37
      %v424 = vand.u32 %v395, 2147483648
      %v425 = vor.u32 1.1754944e-38, %v424
      %v426 = vsel %vm423, %v425, %v421
      %v427 = vmul.f32 1.0, %v426
      %v428 = vrcp.pop %v396
      %v429 = vmul.f32 %v396, %v428
      %v430 = vsub.f32 1.0, %v429
      %v431 = vmul.f32 %v428, %v430
      %v432 = vadd.f32 %v428, %v431
      %vm433 = vweird.f32 %v396
      %vm434 = vweird.f32 %v428
      %vm435 = vmor %vm433, %vm434
      %v436 = vsel %vm435, %v428, %v432
      %v437 = vand.u32 2147483647, %v396
      %vm438 = vcmp.eq.f32.partialorder %v437, 8.507059e+37
      %v439 = vand.u32 %v396, 2147483648
      %v440 = vor.u32 1.1754944e-38, %v439
      %v441 = vsel %vm438, %v440, %v436
      %v442 = vmul.f32 1.0, %v441
      %v443 = vrcp.pop %v397
      %v444 = vmul.f32 %v397, %v443
      %v445 = vsub.f32 1.0, %v444
      %v446 = vmul.f32 %v443, %v445
      %v447 = vadd.f32 %v443, %v446
      %vm448 = vweird.f32 %v397
      %vm449 = vweird.f32 %v443
      %vm450 = vmor %vm448, %vm449
      %v451 = vsel %vm450, %v443, %v447
      %v452 = vand.u32 2147483647, %v397
      %vm453 = vcmp.eq.f32.partialorder %v452, 8.507059e+37
      %v454 = vand.u32 %v397, 2147483648
      %v455 = vor.u32 1.1754944e-38, %v454
      %v456 = vsel %vm453, %v455, %v451
      %v457 = vmul.f32 1.0, %v456
      %v458 = vmul.f32 %v373, %v412
      %v459 = vmul.f32 %v375, %v427
      %v460 = vmul.f32 %v378, %v442
      %v461 = vmul.f32 %v380, %v457
      %v462 = vpack.c.bf16 %v459, %v458
      %v463 = vpack.c.bf16 %v461, %v460
      %v464 = vld [vmem:[%s315] sm:$0xf]
      %v465 = vld [vmem:[%s315 + $0x4] sm:$0xf]
      %v466 = vld [vmem:[%s315 + $0x8] sm:$0xf]
      %v467 = vld [vmem:[%s315 + $0xc] sm:$0xf]
      %v472 = vunpack.c.l.b16 %v464
      %v473 = vunpack.c.l.b16 %v465
      %v474 = vunpack.c.l.b16 %v466
      %v475 = vunpack.c.l.b16 %v467
      %v476 = vpack.c.b16 %v473, %v472
      %v477 = vpack.c.b16 %v475, %v474
      %vm480 = vcmask 261120
      %v482 = vsel %vm480, %v462, 0
      %v485 = vsel %vm480, %v463, 0
      %487 = vmatpush.bf16.msra.mxu0 0
      %488 = vmatpush.bf16.msra.mxu0 0
      %489 = vmatpush.bf16.msra.mxu0 0
      %490 = vmatpush.bf16.msra.mxu0 0
      %491 = vmatpush.bf16.msra.mxu0 0
      %492 = vmatpush.bf16.msra.mxu0 0
      %493 = vmatpush.bf16.msra.mxu0 %v477
      %494 = vmatpush.bf16.msra.mxu0 %v476
      %495 = vmatmul.bf16.gmra.mxu0 %v482
      %v496 = vpop.f32.mrf.mxu0
      %v497 = vadd.f32 0.0, %v496
      %v498 = vpop.f32.mrf.mxu0
      %v499 = vadd.f32 0.0, %v498
      %500 = vmatmul.bf16.gmra.mxu0 %v485
      %v501 = vpop.f32.mrf.mxu0
      %v502 = vadd.f32 0.0, %v501
      %v503 = vpop.f32.mrf.mxu0
      %v504 = vadd.f32 0.0, %v503
      %505 = vdwg.mxu0
      %v506 = vsel %vm480, %v497, 0.0
      %507 = vadd.xlane.f32.xlu0 %v506
      %v508 = vpop.xlane.xlu0 %507
      %v509 = vsel %vm480, %v499, 0.0
      %510 = vadd.xlane.f32.xlu0 %v509
      %v511 = vpop.xlane.xlu0 %510
      %v512 = vsel %vm480, %v502, 0.0
      %513 = vadd.xlane.f32.xlu0 %v512
      %v514 = vpop.xlane.xlu0 %513
      %v515 = vsel %vm480, %v504, 0.0
      %516 = vadd.xlane.f32.xlu0 %v515
      %v517 = vpop.xlane.xlu0 %516
      %v518 = vrcp.pop 32.0
      %v519 = vmul.f32 32.0, %v518
      %v520 = vsub.f32 1.0, %v519
      %v521 = vmul.f32 %v518, %v520
      %v522 = vadd.f32 %v518, %v521
      %vm523 = vweird.f32 %v518
      %v524 = vsel %vm523, %v518, %v522
      %v525 = vmul.f32 %v508, %v524
      %v526 = vmul.f32 %v511, %v524
      %v527 = vmul.f32 %v514, %v524
      %v528 = vmul.f32 %v517, %v524
      %v529 = vsub.f32 %v497, %v525
      %v530 = vsub.f32 %v499, %v526
      %v531 = vsub.f32 %v502, %v527
      %v532 = vsub.f32 %v504, %v528
      %v533 = vmul.f32 %v529, %v529
      %v534 = vmul.f32 %v530, %v530
      %v535 = vmul.f32 %v531, %v531
      %v536 = vmul.f32 %v532, %v532
      %v537 = vsel %vm480, %v533, 0.0
      %538 = vadd.xlane.f32.xlu0 %v537
      %v539 = vpop.xlane.xlu0 %538
      %v540 = vsel %vm480, %v534, 0.0
      %541 = vadd.xlane.f32.xlu0 %v540
      %v542 = vpop.xlane.xlu0 %541
      %v543 = vsel %vm480, %v535, 0.0
      %544 = vadd.xlane.f32.xlu0 %v543
      %v545 = vpop.xlane.xlu0 %544
      %v546 = vsel %vm480, %v536, 0.0
      %547 = vadd.xlane.f32.xlu0 %v546
      %v548 = vpop.xlane.xlu0 %547
      %v549 = vmul.f32 %v539, %v524
      %v550 = vmul.f32 %v542, %v524
      %v551 = vmul.f32 %v545, %v524
      %v552 = vmul.f32 %v548, %v524
      %v553 = vadd.f32 %v549, 1e-05
      %v554 = vadd.f32 %v550, 1e-05
      %v555 = vadd.f32 %v551, 1e-05
      %v556 = vadd.f32 %v552, 1e-05
      %v557 = vrsqrt.pop %v553
      %v558 = vmul.f32 %v557, %v553
      %v559 = vmul.f32 %v558, %v557
      %v560 = vmul.f32 0.5, %v559
      %v561 = vsub.f32 1.5, %v560
      %v562 = vmul.f32 %v557, %v561
      %vm563 = vweird.f32 %v553
      %vm564 = vweird.f32 %v557
      %vm565 = vmor %vm563, %vm564
      %v566 = vsel %vm565, %v557, %v562
      %v567 = vrsqrt.pop %v554
      %v568 = vmul.f32 %v567, %v554
      %v569 = vmul.f32 %v568, %v567
      %v570 = vmul.f32 0.5, %v569
      %v571 = vsub.f32 1.5, %v570
      %v572 = vmul.f32 %v567, %v571
      %vm573 = vweird.f32 %v554
      %vm574 = vweird.f32 %v567
      %vm575 = vmor %vm573, %vm574
      %v576 = vsel %vm575, %v567, %v572
      %v577 = vrsqrt.pop %v555
      %v578 = vmul.f32 %v577, %v555
      %v579 = vmul.f32 %v578, %v577
      %v580 = vmul.f32 0.5, %v579
      %v581 = vsub.f32 1.5, %v580
      %v582 = vmul.f32 %v577, %v581
      %vm583 = vweird.f32 %v555
      %vm584 = vweird.f32 %v577
      %vm585 = vmor %vm583, %vm584
      %v586 = vsel %vm585, %v577, %v582
      %v587 = vrsqrt.pop %v556
      %v588 = vmul.f32 %v587, %v556
      %v589 = vmul.f32 %v588, %v587
      %v590 = vmul.f32 0.5, %v589
      %v591 = vsub.f32 1.5, %v590
      %v592 = vmul.f32 %v587, %v591
      %vm593 = vweird.f32 %v556
      %vm594 = vweird.f32 %v587
      %vm595 = vmor %vm593, %vm594
      %v596 = vsel %vm595, %v587, %v592
      %v597 = vmul.f32 %v529, %v566
      %v598 = vmul.f32 %v530, %v576
      %v599 = vmul.f32 %v531, %v586
      %v600 = vmul.f32 %v532, %v596
      %v601 = vld [vmem:[%s320] sm:$0x1]
      %v603 = vperm.slane %v601, 0
      %v605 = vmul.f32 %v597, %v603
      %v606 = vmul.f32 %v598, %v603
      %v607 = vmul.f32 %v599, %v603
      %v608 = vmul.f32 %v600, %v603
      %v609 = vld [vmem:[%s325] sm:$0x1]
      %v611 = vperm.slane %v609, 0
      %v613 = vadd.f32 %v605, %v611
      %v614 = vadd.f32 %v606, %v611
      %v615 = vadd.f32 %v607, %v611
      %v616 = vadd.f32 %v608, %v611
      %617 = vst.msk [vmem:[%s331] sm:$0xff] %vm480, %v613
      %618 = vst.msk [vmem:[%s331 + $0x8] sm:$0xff] %vm480, %v614
      %619 = vst.msk [vmem:[%s331 + $0x10] sm:$0xff] %vm480, %v615
      %620 = vst.msk [vmem:[%s331 + $0x18] sm:$0xff] %vm480, %v616
      %s621 = smul.u32 4, %s25
      %p622 = scmp.lt.s32.totalorder %s621, 19
      %s623 = scalar_select %p622, %s621, 19
      %s624 = smul.addr %s623, 8
      %s625 = scalar_lea.vmem %s6, %s624
      // Predicated region
      $region41: #{encoder_forward.3} parent=39 // pred_check
        %p626 = pneg %p181
      $region42: #{encoder_forward.3} parent=39 // pred_check_branch
        %628 = sbr.rel (%p626) target = $region44
      $region43: #{encoder_forward.3} parent=39 // pred_region
        %s629 = smul.u32 4, %s25
      $region44: #{encoder_forward.3} parent=39 // pred_fallthru
        _
    $region40: #{encoder_forward.3} parent=5 // pred_fallthru
      _
    %p630 = scmp.le.s32.totalorder 2, %s20
    // Predicated region
    $region45: #{encoder_forward.3} parent=5 // pred_check
      %p631 = pneg %p630
    $region46: #{encoder_forward.3} parent=5 // pred_check_branch
      %633 = sbr.rel (%p631) target = $region48
    $region47: #{encoder_forward.3} parent=5 // pred_region
      %s634 = ssub.s32 %s20, 2
      // Predicated region
      $region49: #{encoder_forward.3} parent=47 // pred_check
        %p635 = pneg %p187
      $region50: #{encoder_forward.3} parent=47 // pred_check_branch
        %637 = sbr.rel (%p635) target = $region52
      $region51: #{encoder_forward.3} parent=47 // pred_region
        %s638 = smul.u32 4, %s26
        %p639 = scmp.lt.s32.totalorder %s638, 19
        %s640 = scalar_select %p639, %s638, 19
        %s641 = smul.addr %s640, 8
        %s642 = scalar_lea.vmem %s6, %s641
      $region52: #{encoder_forward.3} parent=47 // pred_fallthru
        _
    $region48: #{encoder_forward.3} parent=5 // pred_fallthru
      _
  $region6: #{encoder_forward.3} parent=0 // loop_footer
    %s24 = sadd.s32 1, %s20
  $region7: #{encoder_forward.3} parent=0 // loop_footer_branch
    %19 = sbr.rel target = $region3
  $region8: #{encoder_forward.3} parent=0 // loop_exit
    _

// kernel: encoder_forward.4
$region0: #{encoder_forward.4}
  #allocation0 [shape = 'u32[]', space=smem, size = 0x4, offset = 0x4, fixed_abs, tag = 'smem constant byte address 0x4 - core index']
  #allocation1 [shape = 'u32[72,128]{1,0:T(1,128)}', space=vmem, size = 0x9000, scoped, tag = 'internal scratch']
  %s0 = inlined_call_operand.vmem [shape: bf16[8,10], index: 0, kind: input, shape index: {}]
  %s1 = inlined_call_operand.vmem [shape: bf16[2,10,32], index: 1, kind: input, shape index: {}]
  %s2 = inlined_call_operand.vmem [shape: f32[2,8,32], index: 2, kind: output, shape index: {}]
  %s3 = sld [smem:[#allocation0]]
  $region41: #{encoder_forward.4} parent=0
    _
  %s5 = ssub.s32 1, %s3
  %s6 = scalar_select 0, %s5, %s3
  loop: start=0, step=1, limit=4
  $region2: #{encoder_forward.4} parent=0 // loop_pre_header
    _
  $region3: #{encoder_forward.4} parent=0 // loop_header
    %s8 = sphi 0, %s12
    %p9 = scmp.ge.s32.totalorder %s8, 4
    %s16 = sphi 0, %s16
    %s18 = sphi 0, %s16
    %s19 = sphi 0, %s18
    %s33 = sphi 0, %s19
    %s39 = sphi 0, %s41
    %s42 = sphi 0, %s39
    %s43 = sphi 0, %s42
    %s59 = sphi 0, %s43
    %s65 = sphi 0, %s67
    %s68 = sphi 0, %s65
    %s69 = sphi 0, %s68
    %s85 = sphi 0, %s69
  $region4: #{encoder_forward.4} parent=0 // loop_header_branch
    %11 = sbr.rel (%p9) target = $region8
  $region5: #{encoder_forward.4} parent=0 // loop_body
    %s13 = ssub.s32 %s8, 1
    %s14 = ssub.s32 %s8, 2
    %s15 = sadd.s32 %s8, 1
    %s17 = sadd.s32 %s16, 1
    %p20 = scmp.eq.s32.totalorder %s8, 1
    %p21 = scmp.ne.s32.totalorder %s16, %s18
    %p22 = scmp.eq.s32.totalorder %s8, 0
    %p23 = por %p21, %p22
    %p24 = scmp.ne.s32.totalorder %s16, %s18
    %p25 = scmp.eq.s32.totalorder %s13, 1
    %p26 = por %p24, %p25
    %p27 = scmp.ne.s32.totalorder %s18, %s19
    %p28 = scmp.eq.s32.totalorder %s13, 0
    %p29 = por %p27, %p28
    %p30 = scmp.ne.s32.totalorder %s18, %s19
    %p31 = scmp.eq.s32.totalorder %s14, 1
    %p32 = por %p30, %p31
    %p34 = scmp.ne.s32.totalorder %s19, %s33
    %p35 = scmp.eq.s32.totalorder %s14, 0
    %p36 = por %p34, %p35
    %s37 = ssub.s32 %s8, %s15
    %p38 = scmp.eq.s32.totalorder %s37, 0
    %s40 = sadd.s32 %s39, 1
    %s41 = scalar_select %p38, %s39, %s40
    %p44 = pneg %p38
    %p45 = scmp.eq.s32.totalorder %s8, 1
    %p46 = por %p44, %p45
    %p47 = scmp.ne.s32.totalorder %s39, %s42
    %p48 = scmp.eq.s32.totalorder %s8, 0
    %p49 = por %p47, %p48
    %p50 = scmp.ne.s32.totalorder %s39, %s42
    %p51 = scmp.eq.s32.totalorder %s13, 1
    %p52 = por %p50, %p51
    %p53 = scmp.ne.s32.totalorder %s42, %s43
    %p54 = scmp.eq.s32.totalorder %s13, 0
    %p55 = por %p53, %p54
    %p56 = scmp.ne.s32.totalorder %s42, %s43
    %p57 = scmp.eq.s32.totalorder %s14, 1
    %p58 = por %p56, %p57
    %p60 = scmp.ne.s32.totalorder %s43, %s59
    %p61 = scmp.eq.s32.totalorder %s14, 0
    %p62 = por %p60, %p61
    %s63 = ssub.s32 %s8, %s15
    %p64 = scmp.eq.s32.totalorder %s63, 0
    %s66 = sadd.s32 %s65, 1
    %s67 = scalar_select %p64, %s65, %s66
    %p70 = pneg %p64
    %p71 = scmp.eq.s32.totalorder %s8, 1
    %p72 = por %p70, %p71
    %p73 = scmp.ne.s32.totalorder %s65, %s68
    %p74 = scmp.eq.s32.totalorder %s8, 0
    %p75 = por %p73, %p74
    %p76 = scmp.ne.s32.totalorder %s65, %s68
    %p77 = scmp.eq.s32.totalorder %s13, 1
    %p78 = por %p76, %p77
    %p79 = scmp.ne.s32.totalorder %s68, %s69
    %p80 = scmp.eq.s32.totalorder %s13, 0
    %p81 = por %p79, %p80
    %p82 = scmp.ne.s32.totalorder %s68, %s69
    %p83 = scmp.eq.s32.totalorder %s14, 1
    %p84 = por %p82, %p83
    %p86 = scmp.ne.s32.totalorder %s69, %s85
    %p87 = scmp.eq.s32.totalorder %s14, 0
    %p88 = por %p86, %p87
    %p89 = scmp.le.s32.totalorder 1, %s8
    %p90 = scmp.lt.s32.totalorder %s8, 3
    %p91 = pnand %p89, %p90
    %p92 = pneg %p91
    // Predicated region
    $region9: #{encoder_forward.4} parent=5 // pred_check
      _
    $region10: #{encoder_forward.4} parent=5 // pred_check_branch
      %94 = sbr.rel (%p91) target = $region12
    $region11: #{encoder_forward.4} parent=5 // pred_region
      %s95 = ssub.s32 %s8, 1
      // Predicated region
      $region13: #{encoder_forward.4} parent=11 // pred_check
        %p96 = pneg %p29
      $region14: #{encoder_forward.4} parent=11 // pred_check_branch
        %98 = sbr.rel (%p96) target = $region16
      $region15: #{encoder_forward.4} parent=11 // pred_region
        _
      $region16: #{encoder_forward.4} parent=11 // pred_fallthru
        _
    $region12: #{encoder_forward.4} parent=5 // pred_fallthru
      _
    %p99 = scmp.lt.s32.totalorder %s8, 2
    // Predicated region
    $region17: #{encoder_forward.4} parent=5 // pred_check
      %p100 = pneg %p99
    $region18: #{encoder_forward.4} parent=5 // pred_check_branch
      %102 = sbr.rel (%p100) target = $region20
    $region19: #{encoder_forward.4} parent=5 // pred_region
      // Predicated region
      $region21: #{encoder_forward.4} parent=19 // pred_check
        %p103 = pneg %p49
      $region22: #{encoder_forward.4} parent=19 // pred_check_branch
        %105 = sbr.rel (%p103) target = $region24
      $region23: #{encoder_forward.4} parent=19 // pred_region
        %p106 = scmp.lt.s32.totalorder %s8, 1
        %s107 = scalar_select %p106, %s8, 1
        %s108 = smul.addr %s107, 2
        %s109 = smul.addr %s108, 4
        %s110 = scalar_lea.vmem %s1, %s109
      $region24: #{encoder_forward.4} parent=19 // pred_fallthru
        _
    $region20: #{encoder_forward.4} parent=5 // pred_fallthru
      _
    %p111 = scmp.le.s32.totalorder 1, %s8
    %p112 = scmp.lt.s32.totalorder %s8, 3
    %p113 = pnand %p111, %p112
    %p114 = pneg %p113
    // Predicated region
    $region25: #{encoder_forward.4} parent=5 // pred_check
      _
    $region26: #{encoder_forward.4} parent=5 // pred_check_branch
      %116 = sbr.rel (%p113) target = $region28
    $region27: #{encoder_forward.4} parent=5 // pred_region
      %s117 = ssub.s32 %s8, 1
      %p118 = pneg %p29
      %p119 = pneg %p26
      %p120 = scmp.lt.s32.totalorder %s13, 1
      %s121 = scalar_select %p120, %s13, 1
      %s122 = smul.addr %s121, 2
      %s123 = smul.addr %s122, 4
      %s124 = scalar_lea.vmem %s1, %s123
      %p125 = pneg %p55
      %p126 = pneg %p52
      %p127 = pneg %p81
      %p128 = pneg %p78
      %p129 = scmp.lt.s32.totalorder %s13, 1
      %s130 = scalar_select %p129, %s13, 1
      %s131 = smul.addr %s130, 8
      %s132 = scalar_lea.vmem %s2, %s131
      %p133 = scmp.lt.s32.totalorder %s13, 1
      %s134 = scalar_select %p133, %s13, 1
      %s135 = smul.addr %s134, 2
      %s136 = smul.addr %s135, 4
      %s137 = scalar_lea.vmem %s1, %s136
      %p138 = scmp.lt.s32.totalorder %s13, 1
      %s139 = scalar_select %p138, %s13, 1
      %s140 = smul.addr %s139, 8
      %s141 = scalar_lea.vmem %s2, %s140
      %v143 = vld [vmem:[%s0] sm:$0xf]
      %v144 = vld [vmem:[%s137] sm:$0xf]
      %v145 = vld [vmem:[%s137 + $0x4] sm:$0x1]
      %v148 = vunpack.c.l.b16 %v144
      %v149 = vunpack.c.l.b16 %v145
      %v150 = vpack.c.b16 %v149, %v148
      %vm151 = vcmask 80896
      %v153 = vsel %vm151, %v143, 0
      %vm155 = vcmask 1044480
      %v157 = vsel %vm155, %v150, 0
      %159 = vmatpush.bf16.msra.mxu0 0
      %160 = vmatpush.bf16.msra.mxu0 0
      %161 = vmatpush.bf16.msra.mxu0 0
      %162 = vmatpush.bf16.msra.mxu0 0
      %163 = vmatpush.bf16.msra.mxu0 0
      %164 = vmatpush.bf16.msra.mxu0 0
      %165 = vmatpush.bf16.msra.mxu0 0
      %166 = vmatpush.bf16.msra.mxu0 %v157
      %167 = vmatmul.bf16.gmra.mxu0 %v153
      %v168 = vpop.f32.mrf.mxu0
      %v169 = vadd.f32 0.0, %v168
      %v170 = vpop.f32.mrf.mxu0
      %171 = vdwg.mxu0
      %vm172 = vcmask 261120
      %173 = vst.msk [vmem:[%s141] sm:$0xff] %vm172, %v169
      %p174 = scmp.lt.s32.totalorder %s13, 1
      %s175 = scalar_select %p174, %s13, 1
      %s176 = smul.addr %s175, 8
      %s177 = scalar_lea.vmem %s2, %s176
      // Predicated region
      $region29: #{encoder_forward.4} parent=27 // pred_check
        %p178 = pneg %p78
      $region30: #{encoder_forward.4} parent=27 // pred_check_branch
        %180 = sbr.rel (%p178) target = $region32
      $region31: #{encoder_forward.4} parent=27 // pred_region
        _
      $region32: #{encoder_forward.4} parent=27 // pred_fallthru
        _
    $region28: #{encoder_forward.4} parent=5 // pred_fallthru
      _
    %p181 = scmp.le.s32.totalorder 2, %s8
    // Predicated region
    $region33: #{encoder_forward.4} parent=5 // pred_check
      %p182 = pneg %p181
    $region34: #{encoder_forward.4} parent=5 // pred_check_branch
      %184 = sbr.rel (%p182) target = $region36
    $region35: #{encoder_forward.4} parent=5 // pred_region
      %s185 = ssub.s32 %s8, 2
      // Predicated region
      $region37: #{encoder_forward.4} parent=35 // pred_check
        %p186 = pneg %p84
      $region38: #{encoder_forward.4} parent=35 // pred_check_branch
        %188 = sbr.rel (%p186) target = $region40
      $region39: #{encoder_forward.4} parent=35 // pred_region
        %p189 = scmp.lt.s32.totalorder %s14, 1
        %s190 = scalar_select %p189, %s14, 1
        %s191 = smul.addr %s190, 8
        %s192 = scalar_lea.vmem %s2, %s191
      $region40: #{encoder_forward.4} parent=35 // pred_fallthru
        _
    $region36: #{encoder_forward.4} parent=5 // pred_fallthru
      _
  $region6: #{encoder_forward.4} parent=0 // loop_footer
    %s12 = sadd.s32 1, %s8
  $region7: #{encoder_forward.4} parent=0 // loop_footer_branch
    %7 = sbr.rel target = $region3
  $region8: #{encoder_forward.4} parent=0 // loop_exit
    _

// kernel: encoder_forward.5
$region0: #{encoder_forward.5}
  #allocation0 [shape = 'u32[]', space=smem, size = 0x4, offset = 0x4, fixed_abs, tag = 'smem constant byte address 0x4 - core index']
  #allocation1 [shape = 'u32[72,128]{1,0:T(1,128)}', space=vmem, size = 0x9000, scoped, tag = 'internal scratch']
  #allocation2 [shape = 's32[1]{0}', space=sflag, size = 0x4, scoped, tag = 'scoped memory for encoder_forward.5']
  #allocation3 [shape = 'u8[512]{0}', space=smem, size = 0x200, scoped, tag = 'prefetched SMEM operand 0']
  %s0 = inlined_call_operand.vmem [shape: s32[3], index: 0, kind: input, shape index: {}]
  %s1 = inlined_call_operand.vmem [shape: bf16[96,96], index: 1, kind: input, shape index: {}]
  %s2 = inlined_call_operand.vmem [shape: bf16[3,96,32], index: 2, kind: input, shape index: {}]
  %s3 = inlined_call_operand.vmem [shape: bf16[3,32,32], index: 3, kind: input, shape index: {}]
  %s4 = inlined_call_operand.vmem [shape: f32[3,1,32], index: 4, kind: input, shape index: {}]
  %s5 = inlined_call_operand.vmem [shape: f32[3,1,32], index: 5, kind: input, shape index: {}]
  %s6 = inlined_call_operand.vmem [shape: f32[96,32], index: 6, kind: output, shape index: {}]
  %s7 = sld [smem:[#allocation0]]
  $region53: #{encoder_forward.5} parent=0
    _
  %s9 = ssub.s32 1, %s7
  %s10 = scalar_select 0, %s9, %s7
  %s12 = sshll.u32 %s0, 4
  %s13 = int_to_ptr.vmem [resolvable:$true] %s12
  %15 = dma.vmem_to_smem %s13, 16, [#allocation3], [#allocation2]
  %17 = dma.done [#allocation2], 16
  %18 = sfence
  loop: start=0, step=1, limit=5
  $region2: #{encoder_forward.5} parent=0 // loop_pre_header
    _
  $region3: #{encoder_forward.5} parent=0 // loop_header
    %s20 = sphi 0, %s24
    %p21 = scmp.ge.s32.totalorder %s20, 5
    %s30 = sphi 0, %s32
    %s33 = sphi 0, %s30
    %s34 = sphi 0, %s33
    %s50 = sphi 0, %s34
    %s58 = sphi 0, %s60
    %s61 = sphi 0, %s58
    %s62 = sphi 0, %s61
    %s78 = sphi 0, %s62
    %s86 = sphi 0, %s88
    %s89 = sphi 0, %s86
    %s90 = sphi 0, %s89
    %s106 = sphi 0, %s90
    %s114 = sphi 0, %s116
    %s117 = sphi 0, %s114
    %s118 = sphi 0, %s117
    %s134 = sphi 0, %s118
    %s142 = sphi 0, %s144
    %s145 = sphi 0, %s142
    %s146 = sphi 0, %s145
    %s162 = sphi 0, %s146
    %s168 = sphi 0, %s170
    %s171 = sphi 0, %s168
    %s172 = sphi 0, %s171
    %s188 = sphi 0, %s172
  $region4: #{encoder_forward.5} parent=0 // loop_header_branch
    %23 = sbr.rel (%p21) target = $region8
  $region5: #{encoder_forward.5} parent=0 // loop_body
    %s25 = ssub.s32 %s20, 1
    %s26 = ssub.s32 %s20, 2
    %s27 = sadd.s32 %s20, 1
    %s28 = ssub.s32 %s20, %s27
    %p29 = scmp.eq.s32.totalorder %s28, 0
    %s31 = sadd.s32 %s30, 1
    %s32 = scalar_select %p29, %s30, %s31
    %p35 = pneg %p29
    %p36 = scmp.eq.s32.totalorder %s20, 2
    %p37 = por %p35, %p36
    %p38 = scmp.ne.s32.totalorder %s30, %s33
    %p39 = scmp.eq.s32.totalorder %s20, 0
    %p40 = por %p38, %p39
    %p41 = scmp.ne.s32.totalorder %s30, %s33
    %p42 = scmp.eq.s32.totalorder %s25, 2
    %p43 = por %p41, %p42
    %p44 = scmp.ne.s32.totalorder %s33, %s34
    %p45 = scmp.eq.s32.totalorder %s25, 0
    %p46 = por %p44, %p45
    %p47 = scmp.ne.s32.totalorder %s33, %s34
    %p48 = scmp.eq.s32.totalorder %s26, 2
    %p49 = por %p47, %p48
    %p51 = scmp.ne.s32.totalorder %s34, %s50
    %p52 = scmp.eq.s32.totalorder %s26, 0
    %p53 = por %p51, %p52
    %s54 = sld [smem:[#allocation3 + %s20]]
    %s55 = sld [smem:[#allocation3 + %s27]]
    %s56 = ssub.s32 %s54, %s55
    %p57 = scmp.eq.s32.totalorder %s56, 0
    %s59 = sadd.s32 %s58, 1
    %s60 = scalar_select %p57, %s58, %s59
    %p63 = pneg %p57
    %p64 = scmp.eq.s32.totalorder %s20, 2
    %p65 = por %p63, %p64
    %p66 = scmp.ne.s32.totalorder %s58, %s61
    %p67 = scmp.eq.s32.totalorder %s20, 0
    %p68 = por %p66, %p67
    %p69 = scmp.ne.s32.totalorder %s58, %s61
    %p70 = scmp.eq.s32.totalorder %s25, 2
    %p71 = por %p69, %p70
    %p72 = scmp.ne.s32.totalorder %s61, %s62
    %p73 = scmp.eq.s32.totalorder %s25, 0
    %p74 = por %p72, %p73
    %p75 = scmp.ne.s32.totalorder %s61, %s62
    %p76 = scmp.eq.s32.totalorder %s26, 2
    %p77 = por %p75, %p76
    %p79 = scmp.ne.s32.totalorder %s62, %s78
    %p80 = scmp.eq.s32.totalorder %s26, 0
    %p81 = por %p79, %p80
    %s82 = sld [smem:[#allocation3 + %s20]]
    %s83 = sld [smem:[#allocation3 + %s27]]
    %s84 = ssub.s32 %s82, %s83
    %p85 = scmp.eq.s32.totalorder %s84, 0
    %s87 = sadd.s32 %s86, 1
    %s88 = scalar_select %p85, %s86, %s87
    %p91 = pneg %p85
    %p92 = scmp.eq.s32.totalorder %s20, 2
    %p93 = por %p91, %p92
    %p94 = scmp.ne.s32.totalorder %s86, %s89
    %p95 = scmp.eq.s32.totalorder %s20, 0
    %p96 = por %p94, %p95
    %p97 = scmp.ne.s32.totalorder %s86, %s89
    %p98 = scmp.eq.s32.totalorder %s25, 2
    %p99 = por %p97, %p98
    %p100 = scmp.ne.s32.totalorder %s89, %s90
    %p101 = scmp.eq.s32.totalorder %s25, 0
    %p102 = por %p100, %p101
    %p103 = scmp.ne.s32.totalorder %s89, %s90
    %p104 = scmp.eq.s32.totalorder %s26, 2
    %p105 = por %p103, %p104
    %p107 = scmp.ne.s32.totalorder %s90, %s106
    %p108 = scmp.eq.s32.totalorder %s26, 0
    %p109 = por %p107, %p108
    %s110 = sld [smem:[#allocation3 + %s20]]
    %s111 = sld [smem:[#allocation3 + %s27]]
    %s112 = ssub.s32 %s110, %s111
    %p113 = scmp.eq.s32.totalorder %s112, 0
    %s115 = sadd.s32 %s114, 1
    %s116 = scalar_select %p113, %s114, %s115
    %p119 = pneg %p113
    %p120 = scmp.eq.s32.totalorder %s20, 2
    %p121 = por %p119, %p120
    %p122 = scmp.ne.s32.totalorder %s114, %s117
    %p123 = scmp.eq.s32.totalorder %s20, 0
    %p124 = por %p122, %p123
    %p125 = scmp.ne.s32.totalorder %s114, %s117
    %p126 = scmp.eq.s32.totalorder %s25, 2
    %p127 = por %p125, %p126
    %p128 = scmp.ne.s32.totalorder %s117, %s118
    %p129 = scmp.eq.s32.totalorder %s25, 0
    %p130 = por %p128, %p129
    %p131 = scmp.ne.s32.totalorder %s117, %s118
    %p132 = scmp.eq.s32.totalorder %s26, 2
    %p133 = por %p131, %p132
    %p135 = scmp.ne.s32.totalorder %s118, %s134
    %p136 = scmp.eq.s32.totalorder %s26, 0
    %p137 = por %p135, %p136
    %s138 = sld [smem:[#allocation3 + %s20]]
    %s139 = sld [smem:[#allocation3 + %s27]]
    %s140 = ssub.s32 %s138, %s139
    %p141 = scmp.eq.s32.totalorder %s140, 0
    %s143 = sadd.s32 %s142, 1
    %s144 = scalar_select %p141, %s142, %s143
    %p147 = pneg %p141
    %p148 = scmp.eq.s32.totalorder %s20, 2
    %p149 = por %p147, %p148
    %p150 = scmp.ne.s32.totalorder %s142, %s145
    %p151 = scmp.eq.s32.totalorder %s20, 0
    %p152 = por %p150, %p151
    %p153 = scmp.ne.s32.totalorder %s142, %s145
    %p154 = scmp.eq.s32.totalorder %s25, 2
    %p155 = por %p153, %p154
    %p156 = scmp.ne.s32.totalorder %s145, %s146
    %p157 = scmp.eq.s32.totalorder %s25, 0
    %p158 = por %p156, %p157
    %p159 = scmp.ne.s32.totalorder %s145, %s146
    %p160 = scmp.eq.s32.totalorder %s26, 2
    %p161 = por %p159, %p160
    %p163 = scmp.ne.s32.totalorder %s146, %s162
    %p164 = scmp.eq.s32.totalorder %s26, 0
    %p165 = por %p163, %p164
    %s166 = ssub.s32 %s20, %s27
    %p167 = scmp.eq.s32.totalorder %s166, 0
    %s169 = sadd.s32 %s168, 1
    %s170 = scalar_select %p167, %s168, %s169
    %p173 = pneg %p167
    %p174 = scmp.eq.s32.totalorder %s20, 2
    %p175 = por %p173, %p174
    %p176 = scmp.ne.s32.totalorder %s168, %s171
    %p177 = scmp.eq.s32.totalorder %s20, 0
    %p178 = por %p176, %p177
    %p179 = scmp.ne.s32.totalorder %s168, %s171
    %p180 = scmp.eq.s32.totalorder %s25, 2
    %p181 = por %p179, %p180
    %p182 = scmp.ne.s32.totalorder %s171, %s172
    %p183 = scmp.eq.s32.totalorder %s25, 0
    %p184 = por %p182, %p183
    %p185 = scmp.ne.s32.totalorder %s171, %s172
    %p186 = scmp.eq.s32.totalorder %s26, 2
    %p187 = por %p185, %p186
    %p189 = scmp.ne.s32.totalorder %s172, %s188
    %p190 = scmp.eq.s32.totalorder %s26, 0
    %p191 = por %p189, %p190
    %p192 = scmp.le.s32.totalorder 1, %s20
    %p193 = scmp.lt.s32.totalorder %s20, 4
    %p194 = pnand %p192, %p193
    %p195 = pneg %p194
    // Predicated region
    $region9: #{encoder_forward.5} parent=5 // pred_check
      _
    $region10: #{encoder_forward.5} parent=5 // pred_check_branch
      %197 = sbr.rel (%p194) target = $region12
    $region11: #{encoder_forward.5} parent=5 // pred_region
      %s198 = ssub.s32 %s20, 1
    $region12: #{encoder_forward.5} parent=5 // pred_fallthru
      _
    %p199 = scmp.lt.s32.totalorder %s20, 3
    // Predicated region
    $region13: #{encoder_forward.5} parent=5 // pred_check
      %p200 = pneg %p199
    $region14: #{encoder_forward.5} parent=5 // pred_check_branch
      %202 = sbr.rel (%p200) target = $region16
    $region15: #{encoder_forward.5} parent=5 // pred_region
      // Predicated region
      $region17: #{encoder_forward.5} parent=15 // pred_check
        %p203 = pneg %p40
      $region18: #{encoder_forward.5} parent=15 // pred_check_branch
        %205 = sbr.rel (%p203) target = $region20
      $region19: #{encoder_forward.5} parent=15 // pred_region
        %s206 = smul.u32 4, %s20
        %p207 = scmp.lt.s32.totalorder %s206, 11
        %s208 = scalar_select %p207, %s206, 11
        %s209 = smul.addr %s208, 4
        %s210 = scalar_lea.vmem %s1, %s209
        %s211 = smul.u32 4, %s20
      $region20: #{encoder_forward.5} parent=15 // pred_fallthru
        _
      // Predicated region
      $region21: #{encoder_forward.5} parent=15 // pred_check
        %p212 = pneg %p68
      $region22: #{encoder_forward.5} parent=15 // pred_check_branch
        %214 = sbr.rel (%p212) target = $region24
      $region23: #{encoder_forward.5} parent=15 // pred_region
        %s215 = sld [smem:[#allocation3 + %s20]]
        %p216 = scmp.lt.s32.totalorder %s215, 2
        %s217 = scalar_select %p216, %s215, 2
        %s218 = smul.addr %s217, 12
        %s219 = smul.addr %s218, 4
        %s220 = scalar_lea.vmem %s2, %s219
        %s221 = sld [smem:[#allocation3 + %s20]]
      $region24: #{encoder_forward.5} parent=15 // pred_fallthru
        _
      // Predicated region
      $region25: #{encoder_forward.5} parent=15 // pred_check
        %p222 = pneg %p96
      $region26: #{encoder_forward.5} parent=15 // pred_check_branch
        %224 = sbr.rel (%p222) target = $region28
      $region27: #{encoder_forward.5} parent=15 // pred_region
        %s225 = sld [smem:[#allocation3 + %s20]]
        %p226 = scmp.lt.s32.totalorder %s225, 2
        %s227 = scalar_select %p226, %s225, 2
        %s228 = smul.addr %s227, 4
        %s229 = smul.addr %s228, 4
        %s230 = scalar_lea.vmem %s3, %s229
        %s231 = sld [smem:[#allocation3 + %s20]]
      $region28: #{encoder_forward.5} parent=15 // pred_fallthru
        _
      // Predicated region
      $region29: #{encoder_forward.5} parent=15 // pred_check
        %p232 = pneg %p124
      $region30: #{encoder_forward.5} parent=15 // pred_check_branch
        %234 = sbr.rel (%p232) target = $region32
      $region31: #{encoder_forward.5} parent=15 // pred_region
        %s235 = sld [smem:[#allocation3 + %s20]]
        %p236 = scmp.lt.s32.totalorder %s235, 2
        %s237 = scalar_select %p236, %s235, 2
        %s238 = scalar_lea.vmem %s4, %s237
        %s239 = sld [smem:[#allocation3 + %s20]]
      $region32: #{encoder_forward.5} parent=15 // pred_fallthru
        _
      // Predicated region
      $region33: #{encoder_forward.5} parent=15 // pred_check
        %p240 = pneg %p152
      $region34: #{encoder_forward.5} parent=15 // pred_check_branch
        %242 = sbr.rel (%p240) target = $region36
      $region35: #{encoder_forward.5} parent=15 // pred_region
        %s243 = sld [smem:[#allocation3 + %s20]]
        %p244 = scmp.lt.s32.totalorder %s243, 2
        %s245 = scalar_select %p244, %s243, 2
        %s246 = scalar_lea.vmem %s5, %s245
        %s247 = sld [smem:[#allocation3 + %s20]]
      $region36: #{encoder_forward.5} parent=15 // pred_fallthru
        _
    $region16: #{encoder_forward.5} parent=5 // pred_fallthru
      _
    %p248 = scmp.le.s32.totalorder 1, %s20
    %p249 = scmp.lt.s32.totalorder %s20, 4
    %p250 = pnand %p248, %p249
    %p251 = pneg %p250
    // Predicated region
    $region37: #{encoder_forward.5} parent=5 // pred_check
      _
    $region38: #{encoder_forward.5} parent=5 // pred_check_branch
      %253 = sbr.rel (%p250) target = $region40
    $region39: #{encoder_forward.5} parent=5 // pred_region
      %s254 = ssub.s32 %s20, 1
      %s255 = smul.u32 4, %s25
      %p256 = scmp.lt.s32.totalorder %s255, 11
      %s257 = scalar_select %p256, %s255, 11
      %s258 = smul.addr %s257, 4
      %s259 = scalar_lea.vmem %s1, %s258
      %p260 = pneg %p46
      %p261 = pneg %p43
      %s262 = sld [smem:[#allocation3 + %s25]]
      %p263 = scmp.lt.s32.totalorder %s262, 2
      %s264 = scalar_select %p263, %s262, 2
      %s265 = smul.addr %s264, 12
      %s266 = smul.addr %s265, 4
      %s267 = scalar_lea.vmem %s2, %s266
      %p268 = pneg %p74
      %p269 = pneg %p71
      %s270 = sld [smem:[#allocation3 + %s25]]
      %p271 = scmp.lt.s32.totalorder %s270, 2
      %s272 = scalar_select %p271, %s270, 2
      %s273 = smul.addr %s272, 4
      %s274 = smul.addr %s273, 4
      %s275 = scalar_lea.vmem %s3, %s274
      %p276 = pneg %p102
      %p277 = pneg %p99
      %s278 = sld [smem:[#allocation3 + %s25]]
      %p279 = scmp.lt.s32.totalorder %s278, 2
      %s280 = scalar_select %p279, %s278, 2
      %s281 = scalar_lea.vmem %s4, %s280
      %p282 = pneg %p130
      %p283 = pneg %p127
      %s284 = sld [smem:[#allocation3 + %s25]]
      %p285 = scmp.lt.s32.totalorder %s284, 2
      %s286 = scalar_select %p285, %s284, 2
      %s287 = scalar_lea.vmem %s5, %s286
      %p288 = pneg %p158
      %p289 = pneg %p155
      %p290 = pneg %p184
      %p291 = pneg %p181
      %s292 = smul.u32 4, %s25
      %p293 = scmp.lt.s32.totalorder %s292, 11
      %s294 = scalar_select %p293, %s292, 11
      %s295 = smul.addr %s294, 8
      %s296 = scalar_lea.vmem %s6, %s295
      %s297 = smul.u32 4, %s25
      %p298 = scmp.lt.s32.totalorder %s297, 11
      %s299 = scalar_select %p298, %s297, 11
      %s300 = smul.addr %s299, 4
      %s301 = scalar_lea.vmem %s1, %s300
      %s302 = smul.u32 4, %s25
      %s303 = sld [smem:[#allocation3 + %s25]]
      %p304 = scmp.lt.s32.totalorder %s303, 2
      %s305 = scalar_select %p304, %s303, 2
      %s306 = smul.addr %s305, 12
      %s307 = smul.addr %s306, 4
      %s308 = scalar_lea.vmem %s2, %s307
      %s309 = sld [smem:[#allocation3 + %s25]]
      %s310 = sld [smem:[#allocation3 + %s25]]
      %p311 = scmp.lt.s32.totalorder %s310, 2
      %s312 = scalar_select %p311, %s310, 2
      %s313 = smul.addr %s312, 4
      %s314 = smul.addr %s313, 4
      %s315 = scalar_lea.vmem %s3, %s314
      %s316 = sld [smem:[#allocation3 + %s25]]
      %s317 = sld [smem:[#allocation3 + %s25]]
      %p318 = scmp.lt.s32.totalorder %s317, 2
      %s319 = scalar_select %p318, %s317, 2
      %s320 = scalar_lea.vmem %s4, %s319
      %s321 = sld [smem:[#allocation3 + %s25]]
      %s322 = sld [smem:[#allocation3 + %s25]]
      %p323 = scmp.lt.s32.totalorder %s322, 2
      %s324 = scalar_select %p323, %s322, 2
      %s325 = scalar_lea.vmem %s5, %s324
      %s326 = sld [smem:[#allocation3 + %s25]]
      %s327 = smul.u32 4, %s25
      %p328 = scmp.lt.s32.totalorder %s327, 11
      %s329 = scalar_select %p328, %s327, 11
      %s330 = smul.addr %s329, 8
      %s331 = scalar_lea.vmem %s6, %s330
      %s332 = smul.u32 4, %s25
      %v334 = vld [vmem:[%s301] sm:$0xf]
      %v335 = vld [vmem:[%s301 + $0x4] sm:$0xf]
      %v336 = vld [vmem:[%s301 + $0x8] sm:$0xf]
      %v337 = vld [vmem:[%s301 + $0xc] sm:$0xf]
      %v338 = vld [vmem:[%s308] sm:$0xf]
      %v339 = vld [vmem:[%s308 + $0x4] sm:$0xf]
      %v340 = vld [vmem:[%s308 + $0x8] sm:$0xf]
      %v341 = vld [vmem:[%s308 + $0xc] sm:$0xf]
      %v342 = vld [vmem:[%s308 + $0x10] sm:$0xf]
      %v343 = vld [vmem:[%s308 + $0x14] sm:$0xf]
      %v344 = vld [vmem:[%s308 + $0x18] sm:$0xf]
      %v345 = vld [vmem:[%s308 + $0x1c] sm:$0xf]
      %v346 = vld [vmem:[%s308 + $0x20] sm:$0xf]
      %v347 = vld [vmem:[%s308 + $0x24] sm:$0xf]
      %v348 = vld [vmem:[%s308 + $0x28] sm:$0xf]
      %v349 = vld [vmem:[%s308 + $0x2c] sm:$0xf]
      %v354 = vunpack.c.l.b16 %v334
      %v355 = vunpack.c.l.b16 %v335
      %v356 = vunpack.c.l.b16 %v336
      %v357 = vunpack.c.l.b16 %v337
      %v358 = vpack.c.b16 %v355, %v354
      %v359 = vpack.c.b16 %v357, %v356
      %v372 = vunpack.c.l.b16 %v338
      %v373 = vunpack.c.l.b16 %v339
      %v374 = vunpack.c.l.b16 %v340
      %v375 = vunpack.c.l.b16 %v341
      %v376 = vunpack.c.l.b16 %v342
      %v377 = vunpack.c.l.b16 %v343
      %v378 = vunpack.c.l.b16 %v344
      %v379 = vunpack.c.l.b16 %v345
      %v380 = vunpack.c.l.b16 %v346
      %v381 = vunpack.c.l.b16 %v347
      %v382 = vunpack.c.l.b16 %v348
      %v383 = vunpack.c.l.b16 %v349
      %v384 = vpack.c.b16 %v373, %v372
      %v385 = vpack.c.b16 %v375, %v374
      %v386 = vpack.c.b16 %v377, %v376
      %v387 = vpack.c.b16 %v379, %v378
      %v388 = vpack.c.b16 %v381, %v380
      %v389 = vpack.c.b16 %v383, %v382
      %vm396 = vcmask 785408
      %v398 = vsel %vm396, %v358, 0
      %v401 = vsel %vm396, %v359, 0
      %403 = vmatpush.bf16.msra.mxu0 0
      %404 = vmatpush.bf16.msra.mxu0 0
      %405 = vmatpush.bf16.msra.mxu0 %v389
      %406 = vmatpush.bf16.msra.mxu0 %v388
      %407 = vmatpush.bf16.msra.mxu0 %v387
      %408 = vmatpush.bf16.msra.mxu0 %v386
      %409 = vmatpush.bf16.msra.mxu0 %v385
      %410 = vmatpush.bf16.msra.mxu0 %v384
      %411 = vmatmul.bf16.gmra.mxu0 %v398
      %v412 = vpop.f32.mrf.mxu0
      %v413 = vadd.f32 0.0, %v412
      %v414 = vpop.f32.mrf.mxu0
      %v415 = vadd.f32 0.0, %v414
      %416 = vmatmul.bf16.gmra.mxu0 %v401
      %v417 = vpop.f32.mrf.mxu0
      %v418 = vadd.f32 0.0, %v417
      %v419 = vpop.f32.mrf.mxu0
      %v420 = vadd.f32 0.0, %v419
      %421 = vdwg.mxu0
      %v422 = vxor.u32 %v413, 2147483648
      %v423 = vxor.u32 %v415, 2147483648
      %v424 = vxor.u32 %v418, 2147483648
      %v425 = vxor.u32 %v420, 2147483648
      %v426 = vmul.f32 %v422, 1.442695
      %v427 = vpow.pop %v426
      %v428 = vmul.f32 %v423, 1.442695
      %v429 = vpow.pop %v428
      %v430 = vmul.f32 %v424, 1.442695
      %v431 = vpow.pop %v430
      %v432 = vmul.f32 %v425, 1.442695
      %v433 = vpow.pop %v432
      %v434 = vadd.f32 %v427, 1.0
      %v435 = vadd.f32 %v429, 1.0
      %v436 = vadd.f32 %v431, 1.0
      %v437 = vadd.f32 %v433, 1.0
      %v438 = vrcp.pop %v434
      %v439 = vmul.f32 %v434, %v438
      %v440 = vsub.f32 1.0, %v439
      %v441 = vmul.f32 %v438, %v440
      %v442 = vadd.f32 %v438, %v441
      %vm443 = vweird.f32 %v434
      %vm444 = vweird.f32 %v438
      %vm445 = vmor %vm443, %vm444
      %v446 = vsel %vm445, %v438, %v442
      %v447 = vand.u32 2147483647, %v434
      %vm448 = vcmp.eq.f32.partialorder %v447, 8.507059e+37
      %v449 = vand.u32 %v434, 2147483648
      %v450 = vor.u32 1.1754944e-38, %v449
      %v451 = vsel %vm448, %v450, %v446
      %v452 = vmul.f32 1.0, %v451
      %v453 = vrcp.pop %v435
      %v454 = vmul.f32 %v435, %v453
      %v455 = vsub.f32 1.0, %v454
      %v456 = vmul.f32 %v453, %v455
      %v457 = vadd.f32 %v453, %v456
      %vm458 = vweird.f32 %v435
      %vm459 = vweird.f32 %v453
      %vm460 = vmor %vm458, %vm459
      %v461 = vsel %vm460, %v453, %v457
      %v462 = vand.u32 2147483647, %v435
      %vm463 = vcmp.eq.f32.partialorder %v462, 8.507059e+37
      %v464 = vand.u32 %v435, 2147483648
      %v465 = vor.u32 1.1754944e-38, %v464
      %v466 = vsel %vm463, %v465, %v461
      %v467 = vmul.f32 1.0, %v466
      %v468 = vrcp.pop %v436
      %v469 = vmul.f32 %v436, %v468
      %v470 = vsub.f32 1.0, %v469
      %v471 = vmul.f32 %v468, %v470
      %v472 = vadd.f32 %v468, %v471
      %vm473 = vweird.f32 %v436
      %vm474 = vweird.f32 %v468
      %vm475 = vmor %vm473, %vm474
      %v476 = vsel %vm475, %v468, %v472
      %v477 = vand.u32 2147483647, %v436
      %vm478 = vcmp.eq.f32.partialorder %v477, 8.507059e+37
      %v479 = vand.u32 %v436, 2147483648
      %v480 = vor.u32 1.1754944e-38, %v479
      %v481 = vsel %vm478, %v480, %v476
      %v482 = vmul.f32 1.0, %v481
      %v483 = vrcp.pop %v437
      %v484 = vmul.f32 %v437, %v483
      %v485 = vsub.f32 1.0, %v484
      %v486 = vmul.f32 %v483, %v485
      %v487 = vadd.f32 %v483, %v486
      %vm488 = vweird.f32 %v437
      %vm489 = vweird.f32 %v483
      %vm490 = vmor %vm488, %vm489
      %v491 = vsel %vm490, %v483, %v487
      %v492 = vand.u32 2147483647, %v437
      %vm493 = vcmp.eq.f32.partialorder %v492, 8.507059e+37
      %v494 = vand.u32 %v437, 2147483648
      %v495 = vor.u32 1.1754944e-38, %v494
      %v496 = vsel %vm493, %v495, %v491
      %v497 = vmul.f32 1.0, %v496
      %v498 = vmul.f32 %v413, %v452
      %v499 = vmul.f32 %v415, %v467
      %v500 = vmul.f32 %v418, %v482
      %v501 = vmul.f32 %v420, %v497
      %v502 = vpack.c.bf16 %v499, %v498
      %v503 = vpack.c.bf16 %v501, %v500
      %v504 = vld [vmem:[%s315] sm:$0xf]
      %v505 = vld [vmem:[%s315 + $0x4] sm:$0xf]
      %v506 = vld [vmem:[%s315 + $0x8] sm:$0xf]
      %v507 = vld [vmem:[%s315 + $0xc] sm:$0xf]
      %v512 = vunpack.c.l.b16 %v504
      %v513 = vunpack.c.l.b16 %v505
      %v514 = vunpack.c.l.b16 %v506
      %v515 = vunpack.c.l.b16 %v507
      %v516 = vpack.c.b16 %v513, %v512
      %v517 = vpack.c.b16 %v515, %v514
      %vm520 = vcmask 261120
      %v522 = vsel %vm520, %v502, 0
      %v525 = vsel %vm520, %v503, 0
      %527 = vmatpush.bf16.msra.mxu0 0
      %528 = vmatpush.bf16.msra.mxu0 0
      %529 = vmatpush.bf16.msra.mxu0 0
      %530 = vmatpush.bf16.msra.mxu0 0
      %531 = vmatpush.bf16.msra.mxu0 0
      %532 = vmatpush.bf16.msra.mxu0 0
      %533 = vmatpush.bf16.msra.mxu0 %v517
      %534 = vmatpush.bf16.msra.mxu0 %v516
      %535 = vmatmul.bf16.gmra.mxu0 %v522
      %v536 = vpop.f32.mrf.mxu0
      %v537 = vadd.f32 0.0, %v536
      %v538 = vpop.f32.mrf.mxu0
      %v539 = vadd.f32 0.0, %v538
      %540 = vmatmul.bf16.gmra.mxu0 %v525
      %v541 = vpop.f32.mrf.mxu0
      %v542 = vadd.f32 0.0, %v541
      %v543 = vpop.f32.mrf.mxu0
      %v544 = vadd.f32 0.0, %v543
      %545 = vdwg.mxu0
      %v546 = vsel %vm520, %v537, 0.0
      %547 = vadd.xlane.f32.xlu0 %v546
      %v548 = vpop.xlane.xlu0 %547
      %v549 = vsel %vm520, %v539, 0.0
      %550 = vadd.xlane.f32.xlu0 %v549
      %v551 = vpop.xlane.xlu0 %550
      %v552 = vsel %vm520, %v542, 0.0
      %553 = vadd.xlane.f32.xlu0 %v552
      %v554 = vpop.xlane.xlu0 %553
      %v555 = vsel %vm520, %v544, 0.0
      %556 = vadd.xlane.f32.xlu0 %v555
      %v557 = vpop.xlane.xlu0 %556
      %v558 = vrcp.pop 32.0
      %v559 = vmul.f32 32.0, %v558
      %v560 = vsub.f32 1.0, %v559
      %v561 = vmul.f32 %v558, %v560
      %v562 = vadd.f32 %v558, %v561
      %vm563 = vweird.f32 %v558
      %v564 = vsel %vm563, %v558, %v562
      %v565 = vmul.f32 %v548, %v564
      %v566 = vmul.f32 %v551, %v564
      %v567 = vmul.f32 %v554, %v564
      %v568 = vmul.f32 %v557, %v564
      %v569 = vsub.f32 %v537, %v565
      %v570 = vsub.f32 %v539, %v566
      %v571 = vsub.f32 %v542, %v567
      %v572 = vsub.f32 %v544, %v568
      %v573 = vmul.f32 %v569, %v569
      %v574 = vmul.f32 %v570, %v570
      %v575 = vmul.f32 %v571, %v571
      %v576 = vmul.f32 %v572, %v572
      %v577 = vsel %vm520, %v573, 0.0
      %578 = vadd.xlane.f32.xlu0 %v577
      %v579 = vpop.xlane.xlu0 %578
      %v580 = vsel %vm520, %v574, 0.0
      %581 = vadd.xlane.f32.xlu0 %v580
      %v582 = vpop.xlane.xlu0 %581
      %v583 = vsel %vm520, %v575, 0.0
      %584 = vadd.xlane.f32.xlu0 %v583
      %v585 = vpop.xlane.xlu0 %584
      %v586 = vsel %vm520, %v576, 0.0
      %587 = vadd.xlane.f32.xlu0 %v586
      %v588 = vpop.xlane.xlu0 %587
      %v589 = vmul.f32 %v579, %v564
      %v590 = vmul.f32 %v582, %v564
      %v591 = vmul.f32 %v585, %v564
      %v592 = vmul.f32 %v588, %v564
      %v593 = vadd.f32 %v589, 1e-05
      %v594 = vadd.f32 %v590, 1e-05
      %v595 = vadd.f32 %v591, 1e-05
      %v596 = vadd.f32 %v592, 1e-05
      %v597 = vrsqrt.pop %v593
      %v598 = vmul.f32 %v597, %v593
      %v599 = vmul.f32 %v598, %v597
      %v600 = vmul.f32 0.5, %v599
      %v601 = vsub.f32 1.5, %v600
      %v602 = vmul.f32 %v597, %v601
      %vm603 = vweird.f32 %v593
      %vm604 = vweird.f32 %v597
      %vm605 = vmor %vm603, %vm604
      %v606 = vsel %vm605, %v597, %v602
      %v607 = vrsqrt.pop %v594
      %v608 = vmul.f32 %v607, %v594
      %v609 = vmul.f32 %v608, %v607
      %v610 = vmul.f32 0.5, %v609
      %v611 = vsub.f32 1.5, %v610
      %v612 = vmul.f32 %v607, %v611
      %vm613 = vweird.f32 %v594
      %vm614 = vweird.f32 %v607
      %vm615 = vmor %vm613, %vm614
      %v616 = vsel %vm615, %v607, %v612
      %v617 = vrsqrt.pop %v595
      %v618 = vmul.f32 %v617, %v595
      %v619 = vmul.f32 %v618, %v617
      %v620 = vmul.f32 0.5, %v619
      %v621 = vsub.f32 1.5, %v620
      %v622 = vmul.f32 %v617, %v621
      %vm623 = vweird.f32 %v595
      %vm624 = vweird.f32 %v617
      %vm625 = vmor %vm623, %vm624
      %v626 = vsel %vm625, %v617, %v622
      %v627 = vrsqrt.pop %v596
      %v628 = vmul.f32 %v627, %v596
      %v629 = vmul.f32 %v628, %v627
      %v630 = vmul.f32 0.5, %v629
      %v631 = vsub.f32 1.5, %v630
      %v632 = vmul.f32 %v627, %v631
      %vm633 = vweird.f32 %v596
      %vm634 = vweird.f32 %v627
      %vm635 = vmor %vm633, %vm634
      %v636 = vsel %vm635, %v627, %v632
      %v637 = vmul.f32 %v569, %v606
      %v638 = vmul.f32 %v570, %v616
      %v639 = vmul.f32 %v571, %v626
      %v640 = vmul.f32 %v572, %v636
      %v641 = vld [vmem:[%s320] sm:$0x1]
      %v643 = vperm.slane %v641, 0
      %v645 = vmul.f32 %v637, %v643
      %v646 = vmul.f32 %v638, %v643
      %v647 = vmul.f32 %v639, %v643
      %v648 = vmul.f32 %v640, %v643
      %v649 = vld [vmem:[%s325] sm:$0x1]
      %v651 = vperm.slane %v649, 0
      %v653 = vadd.f32 %v645, %v651
      %v654 = vadd.f32 %v646, %v651
      %v655 = vadd.f32 %v647, %v651
      %v656 = vadd.f32 %v648, %v651
      %657 = vst.msk [vmem:[%s331] sm:$0xff] %vm520, %v653
      %658 = vst.msk [vmem:[%s331 + $0x8] sm:$0xff] %vm520, %v654
      %659 = vst.msk [vmem:[%s331 + $0x10] sm:$0xff] %vm520, %v655
      %660 = vst.msk [vmem:[%s331 + $0x18] sm:$0xff] %vm520, %v656
      %s661 = smul.u32 4, %s25
      %p662 = scmp.lt.s32.totalorder %s661, 11
      %s663 = scalar_select %p662, %s661, 11
      %s664 = smul.addr %s663, 8
      %s665 = scalar_lea.vmem %s6, %s664
      // Predicated region
      $region41: #{encoder_forward.5} parent=39 // pred_check
        %p666 = pneg %p181
      $region42: #{encoder_forward.5} parent=39 // pred_check_branch
        %668 = sbr.rel (%p666) target = $region44
      $region43: #{encoder_forward.5} parent=39 // pred_region
        %s669 = smul.u32 4, %s25
      $region44: #{encoder_forward.5} parent=39 // pred_fallthru
        _
    $region40: #{encoder_forward.5} parent=5 // pred_fallthru
      _
    %p670 = scmp.le.s32.totalorder 2, %s20
    // Predicated region
    $region45: #{encoder_forward.5} parent=5 // pred_check
      %p671 = pneg %p670
    $region46: #{encoder_forward.5} parent=5 // pred_check_branch
      %673 = sbr.rel (%p671) target = $region48
    $region47: #{encoder_forward.5} parent=5 // pred_region
      %s674 = ssub.s32 %s20, 2
      // Predicated region
      $region49: #{encoder_forward.5} parent=47 // pred_check
        %p675 = pneg %p187
      $region50: #{encoder_forward.5} parent=47 // pred_check_branch
        %677 = sbr.rel (%p675) target = $region52
      $region51: #{encoder_forward.5} parent=47 // pred_region
        %s678 = smul.u32 4, %s26
        %p679 = scmp.lt.s32.totalorder %s678, 11
        %s680 = scalar_select %p679, %s678, 11
        %s681 = smul.addr %s680, 8
        %s682 = scalar_lea.vmem %s6, %s681
      $region52: #{encoder_forward.5} parent=47 // pred_fallthru
        _
    $region48: #{encoder_forward.5} parent=5 // pred_fallthru
      _
  $region6: #{encoder_forward.5} parent=0 // loop_footer
    %s24 = sadd.s32 1, %s20
  $region7: #{encoder_forward.5} parent=0 // loop_footer_branch
    %19 = sbr.rel target = $region3
  $region8: #{encoder_forward.5} parent=0 // loop_exit
    _

</llo_original>
